<compile_context>
chip_gen: v7x
topology: tpu7x:2x2x1
jax: 0.10.0
libtpu: 0.0.40
codegen_flags: <defaults>
</compile_context>

<pallas_src>
import functools

import jax
import jax.numpy as jnp
from jax.experimental import pallas as pl
from jax.experimental.pallas import tpu as pltpu

_LANES = 128
_MAX_TILE_BYTES = 2 * 1024 * 1024        # ~2 MiB streaming tiles (review rec #2)
_STREAM_MIN_ELEMS = 1 << 16              # smaller params stay fully VMEM-resident
_STREAM_VMEM_BUDGET = 32 * 1024 * 1024   # cap on double-buffered streaming tiles
_VMEM_LIMIT_BYTES = 48 * 1024 * 1024     # < v7x 64 MiB physical; fine on v5e/v6e


def _sublane_mult(dtype):
    """Second-minor tiling multiple for a dtype (8 f32, 16 bf16, 32 int8/fp8)."""
    return max(8, 32 // jnp.dtype(dtype).itemsize)


def _pick_tile_rows(rows, max_rows, mult):
    """Largest tile row count <= max_rows that divides `rows` (multiple of mult)."""
    if rows <= max_rows:
        return rows
    t = (max_rows // mult) * mult
    while t >= mult:
        if rows % t == 0:
            return t
        t -= mult
    return mult  # unreachable: rows % mult == 0 by construction


def _stream_index_map(i, *, start, nsteps):
    # Steps outside [start, start + nsteps) clamp to an already-fetched block,
    # so each tile of this parameter is DMA'd exactly once (1x HBM traffic).
    return jnp.clip(i - start, 0, nsteps - 1), 0


def _make_kernel(*, mu, w_norm, scale, include_l2, n_stream, n_resident,
                 stream_ranges):
    def kernel(*refs):
        pos_ref, neg_ref = refs[0], refs[1]
        stream_refs = refs[2:2 + n_stream]
        resident_refs = refs[2 + n_stream:2 + n_stream + n_resident]
        n_in = 2 + n_stream + n_resident
        loss_ref, task_ref = refs[n_in], refs[n_in + 1]
        acc_ref = refs[n_in + 2] if n_stream else None

        step = pl.program_id(0)

        if n_stream:
            @pl.when(step == 0)
            def _init():
                acc_ref[...] = jnp.zeros_like(acc_ref)

            # Each streamed parameter owns a contiguous range of grid steps.
            for (start, nsteps), p_ref in zip(stream_ranges, stream_refs):
                @pl.when(jnp.logical_and(step >= start, step < start + nsteps))
                def _accumulate(p_ref=p_ref):
                    p = p_ref[...].astype(jnp.float32)       # native dtype -> f32
                    sq = p * p
                    tr = sq.shape[0]
                    # Sublane-group reduce: stays within (8,128) tiles -> pure
                    # VPU adds into a single-vreg accumulator.
                    acc_ref[...] += jnp.sum(
                        sq.reshape(tr // 8, 8, _LANES), axis=0)

        @pl.when(step == pl.num_programs(0) - 1)
        def _finalize():
            pos_v = pos_ref[...].astype(jnp.float32)          # (1, B)
            neg_v = neg_ref[...].astype(jnp.float32)
            diff = jnp.maximum(mu - pos_v + neg_v, 0.0)
            tl = jnp.sum(diff, keepdims=True) * scale         # (1, 1)
            task_ref[...] = tl
            if include_l2:
                l2 = jnp.zeros((1, 1), jnp.float32)
                if n_stream:
                    l2 = l2 + jnp.sum(acc_ref[...], keepdims=True)
                for p_ref in resident_refs:                   # small params
                    v = p_ref[...].astype(jnp.float32)
                    l2 = l2 + jnp.sum(v * v, keepdims=True)
                loss_ref[...] = tl + w_norm * l2
            else:
                loss_ref[...] = tl

    return kernel


def pairwise_loss(pos, neg, parameters, *, mu, w_norm, reduction="mean"):
    """Pallas TPU implementation of PairwiseLoss.forward.

    pos, neg: (B,) arrays.  parameters: iterable of arrays (any shapes/dtypes).
    Returns (loss, task_loss) scalars."""
    params = [p for p in parameters if int(p.size) > 0]
    b = int(pos.shape[0])

    if reduction == "mean":
        scale = 1.0 / float(b)
    elif reduction == "sum":
        scale = 1.0
    else:
        # TODO(synk): reduction='none' (per-sample loss vector) not implemented.
        raise NotImplementedError(f"reduction={reduction!r}")

    mu_f = float(mu)
    w_norm_f = float(w_norm)
    include_l2 = (w_norm_f > 0.0) and (len(params) > 0)

    pos2d = jnp.reshape(pos, (1, b))      # free view, consumed in place
    neg2d = jnp.reshape(neg, (1, b))

    # ---- partition parameters: streamed (large, lane-aligned) vs resident ----
    stream_params = []    # (2-D native-dtype view, tile_rows, nsteps)
    resident_params = []  # small 2-D views, fetched once, reduced in epilogue
    if include_l2:
        candidates = []
        for p in params:
            n = int(p.size)
            mult = _sublane_mult(p.dtype)
            if n >= _STREAM_MIN_ELEMS and n % (_LANES * mult) == 0:
                candidates.append((p, n, mult))
            elif n % _LANES == 0 and n >= _LANES:
                resident_params.append(jnp.reshape(p, (n // _LANES, _LANES)))
            else:
                resident_params.append(jnp.reshape(p, (1, n)))
        if candidates:
            # Shrink per-param tiles if many params stream at once so the
            # double-buffered streaming footprint stays within budget.
            per_tile_budget = max(
                _LANES * 32 * 4,
                min(_MAX_TILE_BYTES, _STREAM_VMEM_BUDGET // (2 * len(candidates))))
            for p, n, mult in candidates:
                itemsize = jnp.dtype(p.dtype).itemsize
                rows = n // _LANES
                max_rows = max(
                    mult,
                    (per_tile_budget // (_LANES * itemsize) // mult) * mult)
                tr = _pick_tile_rows(rows, max_rows, mult)
                stream_params.append((jnp.reshape(p, (rows, _LANES)), tr, rows // tr))

    # ---- grid: single reduction axis over all streaming steps (>= 1) ----
    stream_ranges = []
    off = 0
    for _, _, nsteps in stream_params:
        stream_ranges.append((off, nsteps))
        off += nsteps
    total_steps = max(1, off)

    in_specs = [
        pl.BlockSpec((1, b), lambda i: (0, 0)),     # pos (fetched once)
        pl.BlockSpec((1, b), lambda i: (0, 0)),     # neg (fetched once)
    ]
    inputs = [pos2d, neg2d]
    for (p2d, tr, nsteps), (start, _) in zip(stream_params, stream_ranges):
        in_specs.append(pl.BlockSpec(
            (tr, _LANES),
            functools.partial(_stream_index_map, start=start, nsteps=nsteps)))
        inputs.append(p2d)
    for p2d in resident_params:
        in_specs.append(pl.BlockSpec(p2d.shape, lambda i: (0, 0)))
        inputs.append(p2d)

    kernel = _make_kernel(
        mu=mu_f, w_norm=w_norm_f, scale=scale, include_l2=include_l2,
        n_stream=len(stream_params), n_resident=len(resident_params),
        stream_ranges=stream_ranges)

    scratch_shapes = ([pltpu.VMEM((8, _LANES), jnp.float32)]
                      if stream_params else [])

    loss, task = pl.pallas_call(
        kernel,
        out_shape=(jax.ShapeDtypeStruct((1, 1), jnp.float32),
                   jax.ShapeDtypeStruct((1, 1), jnp.float32)),
        grid_spec=pltpu.PrefetchScalarGridSpec(
            num_scalar_prefetch=0,
            grid=(total_steps,),
            in_specs=in_specs,
            out_specs=[
                pl.BlockSpec((1, 1), lambda i: (0, 0)),
                pl.BlockSpec((1, 1), lambda i: (0, 0)),
            ],
            scratch_shapes=scratch_shapes),
        compiler_params=pltpu.CompilerParams(
            dimension_semantics=("arbitrary",),      # reduction axis
            vmem_limit_bytes=_VMEM_LIMIT_BYTES),
    )(*inputs)

    return loss[0, 0], task[0, 0]


def pairwise_loss_ref(pos, neg, parameters, *, mu, w_norm, reduction="mean"):
    """Plain-JAX reference matching the PyTorch forward."""
    params = list(parameters)
    tl = jnp.maximum(float(mu) - pos.astype(jnp.float32)
                     + neg.astype(jnp.float32), 0.0)
    tl = jnp.mean(tl) if reduction == "mean" else jnp.sum(tl)
    if float(w_norm) > 0.0 and params:
        l2 = sum(jnp.sum(jnp.square(p.astype(jnp.float32))) for p in params)
        return tl + float(w_norm) * l2, tl
    return tl, tl


if __name__ == "__main__":
    key = jax.random.PRNGKey(0)
    B = 2
    k1, k2, k3, k4, k5, k6, k7 = jax.random.split(key, 7)
    pos = jax.random.normal(k1, (B,), jnp.float32)
    neg = jax.random.normal(k2, (B,), jnp.float32)
    parameters = [
        jax.random.normal(k3, (32, 16), jnp.float32),      # small weight -> resident
        jax.random.normal(k4, (32,), jnp.float32),          # bias -> resident
        jax.random.normal(k5, (8, 4, 3), jnp.float32),      # odd shape -> resident
        jax.random.normal(k6, (2048, 512), jnp.float32),    # large f32 -> streamed (2 tiles)
        jax.random.normal(k7, (512, 256), jnp.float32).astype(jnp.bfloat16),  # bf16 streamed natively
    ]
    mu, w_norm = 1.0, 1e-4

    # Case 1 & 2: mean / sum reductions with L2 regularization.
    for reduction in ("mean", "sum"):
        loss, task = pairwise_loss(pos, neg, parameters, mu=mu, w_norm=w_norm,
                                   reduction=reduction)
        jax.block_until_ready(loss)
        rloss, rtask = pairwise_loss_ref(pos, neg, parameters, mu=mu,
                                         w_norm=w_norm, reduction=reduction)
        assert jnp.allclose(loss, rloss, atol=1e-3, rtol=1e-4), (reduction, loss, rloss)
        assert jnp.allclose(task, rtask, atol=1e-5, rtol=1e-5), (reduction, task, rtask)

    # Case 3: w_norm = 0 -> loss == task_loss, parameters untouched.
    loss0, task0 = pairwise_loss(pos, neg, parameters, mu=mu, w_norm=0.0,
                                 reduction="mean")
    jax.block_until_ready(loss0)
    rloss0, rtask0 = pairwise_loss_ref(pos, neg, parameters, mu=mu, w_norm=0.0,
                                       reduction="mean")
    assert jnp.allclose(loss0, rloss0, atol=1e-5, rtol=1e-5), (loss0, rloss0)
    assert jnp.allclose(task0, rtask0, atol=1e-5, rtol=1e-5), (task0, rtask0)
    assert jnp.allclose(loss0, task0, atol=1e-6, rtol=1e-6)

    print("KERNEL_OK")
</pallas_src>

<mosaic_0001>
module attributes {stable_mosaic.version = 11 : i64} {
  func.func @kernel(%arg0: i32, %arg1: memref<1x2xf32, #tpu.memory_space<vmem>>, %arg2: memref<1x2xf32, #tpu.memory_space<vmem>>, %arg3: memref<4096x128xf32, #tpu.memory_space<vmem>>, %arg4: memref<1024x128xbf16, #tpu.memory_space<vmem>>, %arg5: memref<4x128xf32, #tpu.memory_space<vmem>>, %arg6: memref<1x32xf32, #tpu.memory_space<vmem>>, %arg7: memref<1x96xf32, #tpu.memory_space<vmem>>, %arg8: memref<1x1xf32, #tpu.memory_space<vmem>>, %arg9: memref<1x1xf32, #tpu.memory_space<vmem>>, %arg10: memref<8x128xf32, #tpu.memory_space<vmem>>) attributes {dimension_semantics = [#tpu.dimension_semantics<arbitrary>], iteration_bounds = array<i64: 3>, scalar_prefetch = 0 : i64, scratch_operands = 1 : i64, tpu.core_type = #tpu.core_type<tc>, window_params = [{pipeline_mode = #tpu.pipeline_mode<synchronous>, transform_indices = @transform_0, window_bounds = array<i64: 1, 2>}, {pipeline_mode = #tpu.pipeline_mode<synchronous>, transform_indices = @transform_1, window_bounds = array<i64: 1, 2>}, {transform_indices = @transform_2, window_bounds = array<i64: 4096, 128>}, {transform_indices = @transform_3, window_bounds = array<i64: 1024, 128>}, {pipeline_mode = #tpu.pipeline_mode<synchronous>, transform_indices = @transform_4, window_bounds = array<i64: 4, 128>}, {pipeline_mode = #tpu.pipeline_mode<synchronous>, transform_indices = @transform_5, window_bounds = array<i64: 1, 32>}, {pipeline_mode = #tpu.pipeline_mode<synchronous>, transform_indices = @transform_6, window_bounds = array<i64: 1, 96>}, {pipeline_mode = #tpu.pipeline_mode<synchronous>, transform_indices = @transform_7, window_bounds = array<i64: 1, 1>}, {pipeline_mode = #tpu.pipeline_mode<synchronous>, transform_indices = @transform_8, window_bounds = array<i64: 1, 1>}]} {
    %c0_i32 = arith.constant 0 : i32
    %0 = arith.cmpi eq, %arg0, %c0_i32 : i32
    %1 = arith.extui %0 : i1 to i32
    %c0_i32_0 = arith.constant 0 : i32
    %2 = arith.cmpi ne, %1, %c0_i32_0 : i32
    scf.if %2 {
      %cst = arith.constant 0.000000e+00 : f32
      %16 = vector.broadcast %cst : f32 to vector<8x128xf32>
      %c0 = arith.constant 0 : index
      %c0_7 = arith.constant 0 : index
      %17 = vector.load %arg10[%c0, %c0_7] : memref<8x128xf32, #tpu.memory_space<vmem>>, vector<8x128xf32>
      tpu.vector_store %arg10[%c0, %c0_7], %16 {strides = array<i32>} : memref<8x128xf32, #tpu.memory_space<vmem>>, vector<8x128xf32>,
    } else {
    }
    %c0_i32_1 = arith.constant 0 : i32
    %3 = arith.cmpi sge, %arg0, %c0_i32_1 : i32
    %c2_i32 = arith.constant 2 : i32
    %4 = arith.cmpi slt, %arg0, %c2_i32 : i32
    %5 = arith.andi %3, %4 : i1
    %6 = arith.extui %5 : i1 to i32
    %c0_i32_2 = arith.constant 0 : i32
    %7 = arith.cmpi ne, %6, %c0_i32_2 : i32
    scf.if %7 {
      %c0 = arith.constant 0 : index
      %c0_7 = arith.constant 0 : index
      %16 = vector.load %arg3[%c0, %c0_7] : memref<4096x128xf32, #tpu.memory_space<vmem>>, vector<4096x128xf32>
      %17 = arith.mulf %16, %16 : vector<4096x128xf32>
      %c0_8 = arith.constant 0 : index
      %c0_9 = arith.constant 0 : index
      %18 = vector.load %arg10[%c0_8, %c0_9] : memref<8x128xf32, #tpu.memory_space<vmem>>, vector<8x128xf32>
      %19 = vector.shape_cast %17 : vector<4096x128xf32> to vector<512x8x128xf32>
      %cst = arith.constant dense<0.000000e+00> : vector<8x128xf32>
      %20 = vector.multi_reduction <add>, %19, %cst [0] : vector<512x8x128xf32> to vector<8x128xf32>
      %21 = arith.addf %18, %20 : vector<8x128xf32>
      %c0_10 = arith.constant 0 : index
      %c0_11 = arith.constant 0 : index
      %22 = vector.load %arg10[%c0_10, %c0_11] : memref<8x128xf32, #tpu.memory_space<vmem>>, vector<8x128xf32>
      tpu.vector_store %arg10[%c0_10, %c0_11], %21 {strides = array<i32>} : memref<8x128xf32, #tpu.memory_space<vmem>>, vector<8x128xf32>,
    } else {
    }
    %c2_i32_3 = arith.constant 2 : i32
    %8 = arith.cmpi sge, %arg0, %c2_i32_3 : i32
    %c3_i32 = arith.constant 3 : i32
    %9 = arith.cmpi slt, %arg0, %c3_i32 : i32
    %10 = arith.andi %8, %9 : i1
    %11 = arith.extui %10 : i1 to i32
    %c0_i32_4 = arith.constant 0 : i32
    %12 = arith.cmpi ne, %11, %c0_i32_4 : i32
    scf.if %12 {
      %c0 = arith.constant 0 : index
      %c0_7 = arith.constant 0 : index
      %16 = vector.load %arg4[%c0, %c0_7] : memref<1024x128xbf16, #tpu.memory_space<vmem>>, vector<1024x128xbf16>
      %17 = arith.extf %16 : vector<1024x128xbf16> to vector<1024x128xf32>
      %18 = arith.mulf %17, %17 : vector<1024x128xf32>
      %c0_8 = arith.constant 0 : index
      %c0_9 = arith.constant 0 : index
      %19 = vector.load %arg10[%c0_8, %c0_9] : memref<8x128xf32, #tpu.memory_space<vmem>>, vector<8x128xf32>
      %20 = vector.shape_cast %18 : vector<1024x128xf32> to vector<128x8x128xf32>
      %cst = arith.constant dense<0.000000e+00> : vector<8x128xf32>
      %21 = vector.multi_reduction <add>, %20, %cst [0] : vector<128x8x128xf32> to vector<8x128xf32>
      %22 = arith.addf %19, %21 : vector<8x128xf32>
      %c0_10 = arith.constant 0 : index
      %c0_11 = arith.constant 0 : index
      %23 = vector.load %arg10[%c0_10, %c0_11] : memref<8x128xf32, #tpu.memory_space<vmem>>, vector<8x128xf32>
      tpu.vector_store %arg10[%c0_10, %c0_11], %22 {strides = array<i32>} : memref<8x128xf32, #tpu.memory_space<vmem>>, vector<8x128xf32>,
    } else {
    }
    %c2_i32_5 = arith.constant 2 : i32
    %13 = arith.cmpi eq, %arg0, %c2_i32_5 : i32
    %14 = arith.extui %13 : i1 to i32
    %c0_i32_6 = arith.constant 0 : i32
    %15 = arith.cmpi ne, %14, %c0_i32_6 : i32
    scf.if %15 {
      %c0 = arith.constant 0 : index
      %c0_7 = arith.constant 0 : index
      %16 = vector.load %arg1[%c0, %c0_7] : memref<1x2xf32, #tpu.memory_space<vmem>>, vector<1x2xf32>
      %c0_8 = arith.constant 0 : index
      %c0_9 = arith.constant 0 : index
      %17 = vector.load %arg2[%c0_8, %c0_9] : memref<1x2xf32, #tpu.memory_space<vmem>>, vector<1x2xf32>
      %cst = arith.constant 1.000000e+00 : f32
      %18 = vector.broadcast %cst : f32 to vector<1x2xf32>
      %19 = arith.subf %18, %16 : vector<1x2xf32>
      %20 = arith.addf %19, %17 : vector<1x2xf32>
      %cst_10 = arith.constant 0.000000e+00 : f32
      %21 = vector.broadcast %cst_10 : f32 to vector<1x2xf32>
      %22 = arith.maximumf %20, %21 : vector<1x2xf32>
      %23 = vector.shape_cast %22 : vector<1x2xf32> to vector<1x1x2xf32>
      %cst_11 = arith.constant dense<0.000000e+00> : vector<1xf32>
      %24 = vector.multi_reduction <add>, %23, %cst_11 [1, 2] : vector<1x1x2xf32> to vector<1xf32>
      %25 = vector.shape_cast %24 : vector<1xf32> to vector<1x1x1xf32>
      %26 = vector.extract %25[0, 0, 0] : f32 from vector<1x1x1xf32>
      %27 = vector.broadcast %26 : f32 to vector<1x1xf32>
      %cst_12 = arith.constant 5.000000e-01 : f32
      %28 = vector.broadcast %cst_12 : f32 to vector<1x1xf32>
      %29 = arith.mulf %27, %28 : vector<1x1xf32>
      %c0_13 = arith.constant 0 : index
      %c0_14 = arith.constant 0 : index
      %30 = vector.load %arg9[%c0_13, %c0_14] : memref<1x1xf32, #tpu.memory_space<vmem>>, vector<1x1xf32>
      tpu.vector_store %arg9[%c0_13, %c0_14], %29 {strides = array<i32>} : memref<1x1xf32, #tpu.memory_space<vmem>>, vector<1x1xf32>,
      %cst_15 = arith.constant 0.000000e+00 : f32
      %31 = vector.broadcast %cst_15 : f32 to vector<1x1xf32>
      %c0_16 = arith.constant 0 : index
      %c0_17 = arith.constant 0 : index
      %32 = vector.load %arg10[%c0_16, %c0_17] : memref<8x128xf32, #tpu.memory_space<vmem>>, vector<8x128xf32>
      %33 = vector.shape_cast %32 : vector<8x128xf32> to vector<1x8x128xf32>
      %cst_18 = arith.constant dense<0.000000e+00> : vector<1xf32>
      %34 = vector.multi_reduction <add>, %33, %cst_18 [1, 2] : vector<1x8x128xf32> to vector<1xf32>
      %35 = vector.shape_cast %34 : vector<1xf32> to vector<1x1x1xf32>
      %36 = vector.extract %35[0, 0, 0] : f32 from vector<1x1x1xf32>
      %37 = vector.broadcast %36 : f32 to vector<1x1xf32>
      %38 = arith.addf %31, %37 : vector<1x1xf32>
      %c0_19 = arith.constant 0 : index
      %c0_20 = arith.constant 0 : index
      %39 = vector.load %arg5[%c0_19, %c0_20] : memref<4x128xf32, #tpu.memory_space<vmem>>, vector<4x128xf32>
      %40 = arith.mulf %39, %39 : vector<4x128xf32>
      %41 = vector.shape_cast %40 : vector<4x128xf32> to vector<1x4x128xf32>
      %cst_21 = arith.constant dense<0.000000e+00> : vector<1xf32>
      %42 = vector.multi_reduction <add>, %41, %cst_21 [1, 2] : vector<1x4x128xf32> to vector<1xf32>
      %43 = vector.shape_cast %42 : vector<1xf32> to vector<1x1x1xf32>
      %44 = vector.extract %43[0, 0, 0] : f32 from vector<1x1x1xf32>
      %45 = vector.broadcast %44 : f32 to vector<1x1xf32>
      %46 = arith.addf %38, %45 : vector<1x1xf32>
      %c0_22 = arith.constant 0 : index
      %c0_23 = arith.constant 0 : index
      %47 = vector.load %arg6[%c0_22, %c0_23] : memref<1x32xf32, #tpu.memory_space<vmem>>, vector<1x32xf32>
      %48 = arith.mulf %47, %47 : vector<1x32xf32>
      %49 = vector.shape_cast %48 : vector<1x32xf32> to vector<1x1x32xf32>
      %cst_24 = arith.constant dense<0.000000e+00> : vector<1xf32>
      %50 = vector.multi_reduction <add>, %49, %cst_24 [1, 2] : vector<1x1x32xf32> to vector<1xf32>
      %51 = vector.shape_cast %50 : vector<1xf32> to vector<1x1x1xf32>
      %52 = vector.extract %51[0, 0, 0] : f32 from vector<1x1x1xf32>
      %53 = vector.broadcast %52 : f32 to vector<1x1xf32>
      %54 = arith.addf %46, %53 : vector<1x1xf32>
      %c0_25 = arith.constant 0 : index
      %c0_26 = arith.constant 0 : index
      %55 = vector.load %arg7[%c0_25, %c0_26] : memref<1x96xf32, #tpu.memory_space<vmem>>, vector<1x96xf32>
      %56 = arith.mulf %55, %55 : vector<1x96xf32>
      %57 = vector.shape_cast %56 : vector<1x96xf32> to vector<1x1x96xf32>
      %cst_27 = arith.constant dense<0.000000e+00> : vector<1xf32>
      %58 = vector.multi_reduction <add>, %57, %cst_27 [1, 2] : vector<1x1x96xf32> to vector<1xf32>
      %59 = vector.shape_cast %58 : vector<1xf32> to vector<1x1x1xf32>
      %60 = vector.extract %59[0, 0, 0] : f32 from vector<1x1x1xf32>
      %61 = vector.broadcast %60 : f32 to vector<1x1xf32>
      %62 = arith.addf %54, %61 : vector<1x1xf32>
      %cst_28 = arith.constant 9.99999974E-5 : f32
      %63 = vector.broadcast %cst_28 : f32 to vector<1x1xf32>
      %64 = arith.mulf %63, %62 : vector<1x1xf32>
      %65 = arith.addf %29, %64 : vector<1x1xf32>
      %c0_29 = arith.constant 0 : index
      %c0_30 = arith.constant 0 : index
      %66 = vector.load %arg8[%c0_29, %c0_30] : memref<1x1xf32, #tpu.memory_space<vmem>>, vector<1x1xf32>
      tpu.vector_store %arg8[%c0_29, %c0_30], %65 {strides = array<i32>} : memref<1x1xf32, #tpu.memory_space<vmem>>, vector<1x1xf32>,
    } else {
    }
    return
  }
  func.func @transform_0(%arg0: i32) -> (i32, i32) {
    %c0_i32 = arith.constant 0 : i32
    %c0_i32_0 = arith.constant 0 : i32
    %c0_i32_1 = arith.constant 0 : i32
    return %c0_i32, %c0_i32_0 : i32, i32
  }
  func.func @transform_1(%arg0: i32) -> (i32, i32) {
    %c0_i32 = arith.constant 0 : i32
    %c0_i32_0 = arith.constant 0 : i32
    %c0_i32_1 = arith.constant 0 : i32
    return %c0_i32, %c0_i32_0 : i32, i32
  }
  func.func @transform_2(%arg0: i32) -> (i32, i32) {
    %c0_i32 = arith.constant 0 : i32
    %0 = arith.subi %arg0, %c0_i32 : i32
    %c0_i32_0 = arith.constant 0 : i32
    %c1_i32 = arith.constant 1 : i32
    %1 = arith.maxsi %c0_i32_0, %0 : i32
    %2 = arith.minsi %c1_i32, %1 : i32
    %c0_i32_1 = arith.constant 0 : i32
    %c0_i32_2 = arith.constant 0 : i32
    return %2, %c0_i32_1 : i32, i32
  }
  func.func @transform_3(%arg0: i32) -> (i32, i32) {
    %c2_i32 = arith.constant 2 : i32
    %0 = arith.subi %arg0, %c2_i32 : i32
    %c0_i32 = arith.constant 0 : i32
    %c0_i32_0 = arith.constant 0 : i32
    %1 = arith.maxsi %c0_i32, %0 : i32
    %2 = arith.minsi %c0_i32_0, %1 : i32
    %c0_i32_1 = arith.constant 0 : i32
    %c0_i32_2 = arith.constant 0 : i32
    return %2, %c0_i32_1 : i32, i32
  }
  func.func @transform_4(%arg0: i32) -> (i32, i32) {
    %c0_i32 = arith.constant 0 : i32
    %c0_i32_0 = arith.constant 0 : i32
    %c0_i32_1 = arith.constant 0 : i32
    return %c0_i32, %c0_i32_0 : i32, i32
  }
  func.func @transform_5(%arg0: i32) -> (i32, i32) {
    %c0_i32 = arith.constant 0 : i32
    %c0_i32_0 = arith.constant 0 : i32
    %c0_i32_1 = arith.constant 0 : i32
    return %c0_i32, %c0_i32_0 : i32, i32
  }
  func.func @transform_6(%arg0: i32) -> (i32, i32) {
    %c0_i32 = arith.constant 0 : i32
    %c0_i32_0 = arith.constant 0 : i32
    %c0_i32_1 = arith.constant 0 : i32
    return %c0_i32, %c0_i32_0 : i32, i32
  }
  func.func @transform_7(%arg0: i32) -> (i32, i32) {
    %c0_i32 = arith.constant 0 : i32
    %c0_i32_0 = arith.constant 0 : i32
    %c0_i32_1 = arith.constant 0 : i32
    return %c0_i32, %c0_i32_0 : i32, i32
  }
  func.func @transform_8(%arg0: i32) -> (i32, i32) {
    %c0_i32 = arith.constant 0 : i32
    %c0_i32_0 = arith.constant 0 : i32
    %c0_i32_1 = arith.constant 0 : i32
    return %c0_i32, %c0_i32_0 : i32, i32
  }
}

</mosaic_0001>

<llo_original>
// kernel: tpu_custom_call.1
$region0: #{tpu_custom_call.1}
  #allocation0 [shape = 'u32[]', space=smem, size = 0x4, offset = 0x4, fixed_abs, tag = 'smem constant byte address 0x4 - core index']
  #allocation1 [shape = 'u32[144,128]{1,0:T(1,128)}', space=vmem, size = 0x12000, scoped, tag = 'internal scratch']
  #allocation2 [shape = 'f32[8,128]{1,0:T(8,128)}', space=vmem, size = 0x1000, scoped, tag = 'scratch operand']
  %s0 = inlined_call_operand.hbm [shape: f32[1,2], index: 0, kind: input, shape index: {}]
  %s1 = inlined_call_operand.hbm [shape: f32[1,2], index: 1, kind: input, shape index: {}]
  %s2 = inlined_call_operand.hbm [shape: f32[8192,128], index: 2, kind: input, shape index: {}]
  %s3 = inlined_call_operand.hbm [shape: bf16[1024,128], index: 3, kind: input, shape index: {}]
  %s4 = inlined_call_operand.hbm [shape: f32[4,128], index: 4, kind: input, shape index: {}]
  %s5 = inlined_call_operand.hbm [shape: f32[1,32], index: 5, kind: input, shape index: {}]
  %s6 = inlined_call_operand.hbm [shape: f32[1,96], index: 6, kind: input, shape index: {}]
  %s7 = inlined_call_operand.hbm [shape: f32[1,1], index: 7, kind: output, shape index: {0}]
  %s8 = inlined_call_operand.hbm [shape: f32[1,1], index: 8, kind: output, shape index: {1}]
  %9 = xla_tuple %s7, %s8
  %s10 = sld [smem:[#allocation0]]
  $region113: #{tpu_custom_call.1} parent=0
    _
  %s12 = ssub.s32 1, %s10
  %s13 = scalar_select 0, %s12, %s10
  $region1: #{tpu_custom_call.1} parent=0
    #allocation3 [shape = 'u8[512]{0}', space=vmem, size = 0x400, scoped, tag = 'input window, operand 0, single buffered']
    #allocation4 [shape = 's32[2]{0}', space=sflag, size = 0x8, scoped, tag = 'scoped memory for tpu_custom_call.1']
    #allocation5 [shape = 's32[2]{0}', space=sflag, size = 0x8, scoped, tag = 'scoped memory for tpu_custom_call.1']
    #allocation6 [shape = 'u8[512]{0}', space=vmem, size = 0x400, scoped, tag = 'input window, operand 1, single buffered']
    #allocation7 [shape = 's32[1]{0}', space=sflag, size = 0x4, scoped, tag = 'scoped memory for tpu_custom_call.1']
    #allocation8 [shape = 'u8[4194304]{0}', space=vmem, size = 0x400000, scoped, tag = 'input window, operand 2']
    #allocation9 [shape = 'u8[524288]{0}', space=vmem, size = 0x80000, scoped, tag = 'input window, operand 3']
    #allocation10 [shape = 'u8[2048]{0}', space=vmem, size = 0x800, scoped, tag = 'input window, operand 4, single buffered']
    #allocation11 [shape = 'u8[512]{0}', space=vmem, size = 0x400, scoped, tag = 'input window, operand 5, single buffered']
    #allocation12 [shape = 's32[1]{0}', space=sflag, size = 0x4, scoped, tag = 'scoped memory for tpu_custom_call.1']
    #allocation13 [shape = 'u8[512]{0}', space=vmem, size = 0x400, scoped, tag = 'input window, operand 6, single buffered']
    #allocation14 [shape = 'u8[512]{0}', space=vmem, size = 0x400, scoped, tag = 'output window, operand 0, single buffered']
    #allocation15 [shape = 'u8[512]{0}', space=vmem, size = 0x400, scoped, tag = 'output window, operand 1, single buffered']
    #allocation16 [shape = 's32[1]{0}', space=sflag, size = 0x4, scoped, tag = 'scoped memory for tpu_custom_call.1']
    %14 = vsyncpa [#allocation4], 0
    %15 = vsyncpa [#allocation7], 0
    %16 = vsyncpa [#allocation12], 0
    %17 = vsyncpa [#allocation5], 0
    %18 = vsyncpa [#allocation16], 0
    loop: start=0, step=1, limit=5
    $region2: #{tpu_custom_call.1} parent=1 // loop_pre_header
      _
    $region3: #{tpu_custom_call.1} parent=1 // loop_header
      %s20 = sphi 0, %s24
      %p21 = scmp.ge.s32.totalorder %s20, 5
      %s28 = sphi 0, %s28
      %s30 = sphi 0, %s28
      %s31 = sphi 0, %s30
      %s45 = sphi 0, %s31
      %s49 = sphi 0, %s49
      %s51 = sphi 0, %s49
      %s52 = sphi 0, %s51
      %s66 = sphi 0, %s52
      %s80 = sphi 0, %s82
      %s83 = sphi 0, %s80
      %s84 = sphi 0, %s83
      %s100 = sphi 0, %s84
      %s116 = sphi 0, %s118
      %s119 = sphi 0, %s116
      %s120 = sphi 0, %s119
      %s136 = sphi 0, %s120
      %s140 = sphi 0, %s140
      %s142 = sphi 0, %s140
      %s143 = sphi 0, %s142
      %s157 = sphi 0, %s143
      %s161 = sphi 0, %s161
      %s163 = sphi 0, %s161
      %s164 = sphi 0, %s163
      %s178 = sphi 0, %s164
      %s182 = sphi 0, %s182
      %s184 = sphi 0, %s182
      %s185 = sphi 0, %s184
      %s199 = sphi 0, %s185
      %s203 = sphi 0, %s203
      %s205 = sphi 0, %s203
      %s206 = sphi 0, %s205
      %s220 = sphi 0, %s206
      %s224 = sphi 0, %s224
      %s226 = sphi 0, %s224
      %s227 = sphi 0, %s226
      %s241 = sphi 0, %s227
    $region4: #{tpu_custom_call.1} parent=1 // loop_header_branch
      %23 = sbr.rel (%p21) target = $region8
    $region5: #{tpu_custom_call.1} parent=1 // loop_body
      %s25 = ssub.s32 %s20, 1
      %s26 = ssub.s32 %s20, 2
      %s27 = sadd.s32 %s20, 1
      %s29 = sadd.s32 %s28, 1
      %p32 = scmp.eq.s32.totalorder %s20, 2
      %p33 = scmp.ne.s32.totalorder %s28, %s30
      %p34 = scmp.eq.s32.totalorder %s20, 0
      %p35 = por %p33, %p34
      %p36 = scmp.ne.s32.totalorder %s28, %s30
      %p37 = scmp.eq.s32.totalorder %s25, 2
      %p38 = por %p36, %p37
      %p39 = scmp.ne.s32.totalorder %s30, %s31
      %p40 = scmp.eq.s32.totalorder %s25, 0
      %p41 = por %p39, %p40
      %p42 = scmp.ne.s32.totalorder %s30, %s31
      %p43 = scmp.eq.s32.totalorder %s26, 2
      %p44 = por %p42, %p43
      %p46 = scmp.ne.s32.totalorder %s31, %s45
      %p47 = scmp.eq.s32.totalorder %s26, 0
      %p48 = por %p46, %p47
      %s50 = sadd.s32 %s49, 1
      %p53 = scmp.eq.s32.totalorder %s20, 2
      %p54 = scmp.ne.s32.totalorder %s49, %s51
      %p55 = scmp.eq.s32.totalorder %s20, 0
      %p56 = por %p54, %p55
      %p57 = scmp.ne.s32.totalorder %s49, %s51
      %p58 = scmp.eq.s32.totalorder %s25, 2
      %p59 = por %p57, %p58
      %p60 = scmp.ne.s32.totalorder %s51, %s52
      %p61 = scmp.eq.s32.totalorder %s25, 0
      %p62 = por %p60, %p61
      %p63 = scmp.ne.s32.totalorder %s51, %s52
      %p64 = scmp.eq.s32.totalorder %s26, 2
      %p65 = por %p63, %p64
      %p67 = scmp.ne.s32.totalorder %s52, %s66
      %p68 = scmp.eq.s32.totalorder %s26, 0
      %p69 = por %p67, %p68
      %p70 = scmp.gt.s32.totalorder %s20, 0
      %s71 = scalar_select %p70, %s20, 0
      %p72 = scmp.lt.s32.totalorder %s71, 1
      %s73 = scalar_select %p72, %s71, 1
      %p74 = scmp.gt.s32.totalorder %s27, 0
      %s75 = scalar_select %p74, %s27, 0
      %p76 = scmp.lt.s32.totalorder %s75, 1
      %s77 = scalar_select %p76, %s75, 1
      %s78 = ssub.s32 %s73, %s77
      %p79 = scmp.eq.s32.totalorder %s78, 0
      %s81 = sadd.s32 %s80, 1
      %s82 = scalar_select %p79, %s80, %s81
      %p85 = pneg %p79
      %p86 = scmp.eq.s32.totalorder %s20, 2
      %p87 = por %p85, %p86
      %p88 = scmp.ne.s32.totalorder %s80, %s83
      %p89 = scmp.eq.s32.totalorder %s20, 0
      %p90 = por %p88, %p89
      %p91 = scmp.ne.s32.totalorder %s80, %s83
      %p92 = scmp.eq.s32.totalorder %s25, 2
      %p93 = por %p91, %p92
      %p94 = scmp.ne.s32.totalorder %s83, %s84
      %p95 = scmp.eq.s32.totalorder %s25, 0
      %p96 = por %p94, %p95
      %p97 = scmp.ne.s32.totalorder %s83, %s84
      %p98 = scmp.eq.s32.totalorder %s26, 2
      %p99 = por %p97, %p98
      %p101 = scmp.ne.s32.totalorder %s84, %s100
      %p102 = scmp.eq.s32.totalorder %s26, 0
      %p103 = por %p101, %p102
      %s104 = ssub.s32 %s20, 2
      %p105 = scmp.gt.s32.totalorder %s104, 0
      %s106 = scalar_select %p105, %s104, 0
      %p107 = scmp.lt.s32.totalorder %s106, 0
      %s108 = scalar_select %p107, %s106, 0
      %s109 = ssub.s32 %s27, 2
      %p110 = scmp.gt.s32.totalorder %s109, 0
      %s111 = scalar_select %p110, %s109, 0
      %p112 = scmp.lt.s32.totalorder %s111, 0
      %s113 = scalar_select %p112, %s111, 0
      %s114 = ssub.s32 %s108, %s113
      %p115 = scmp.eq.s32.totalorder %s114, 0
      %s117 = sadd.s32 %s116, 1
      %s118 = scalar_select %p115, %s116, %s117
      %p121 = pneg %p115
      %p122 = scmp.eq.s32.totalorder %s20, 2
      %p123 = por %p121, %p122
      %p124 = scmp.ne.s32.totalorder %s116, %s119
      %p125 = scmp.eq.s32.totalorder %s20, 0
      %p126 = por %p124, %p125
      %p127 = scmp.ne.s32.totalorder %s116, %s119
      %p128 = scmp.eq.s32.totalorder %s25, 2
      %p129 = por %p127, %p128
      %p130 = scmp.ne.s32.totalorder %s119, %s120
      %p131 = scmp.eq.s32.totalorder %s25, 0
      %p132 = por %p130, %p131
      %p133 = scmp.ne.s32.totalorder %s119, %s120
      %p134 = scmp.eq.s32.totalorder %s26, 2
      %p135 = por %p133, %p134
      %p137 = scmp.ne.s32.totalorder %s120, %s136
      %p138 = scmp.eq.s32.totalorder %s26, 0
      %p139 = por %p137, %p138
      %s141 = sadd.s32 %s140, 1
      %p144 = scmp.eq.s32.totalorder %s20, 2
      %p145 = scmp.ne.s32.totalorder %s140, %s142
      %p146 = scmp.eq.s32.totalorder %s20, 0
      %p147 = por %p145, %p146
      %p148 = scmp.ne.s32.totalorder %s140, %s142
      %p149 = scmp.eq.s32.totalorder %s25, 2
      %p150 = por %p148, %p149
      %p151 = scmp.ne.s32.totalorder %s142, %s143
      %p152 = scmp.eq.s32.totalorder %s25, 0
      %p153 = por %p151, %p152
      %p154 = scmp.ne.s32.totalorder %s142, %s143
      %p155 = scmp.eq.s32.totalorder %s26, 2
      %p156 = por %p154, %p155
      %p158 = scmp.ne.s32.totalorder %s143, %s157
      %p159 = scmp.eq.s32.totalorder %s26, 0
      %p160 = por %p158, %p159
      %s162 = sadd.s32 %s161, 1
      %p165 = scmp.eq.s32.totalorder %s20, 2
      %p166 = scmp.ne.s32.totalorder %s161, %s163
      %p167 = scmp.eq.s32.totalorder %s20, 0
      %p168 = por %p166, %p167
      %p169 = scmp.ne.s32.totalorder %s161, %s163
      %p170 = scmp.eq.s32.totalorder %s25, 2
      %p171 = por %p169, %p170
      %p172 = scmp.ne.s32.totalorder %s163, %s164
      %p173 = scmp.eq.s32.totalorder %s25, 0
      %p174 = por %p172, %p173
      %p175 = scmp.ne.s32.totalorder %s163, %s164
      %p176 = scmp.eq.s32.totalorder %s26, 2
      %p177 = por %p175, %p176
      %p179 = scmp.ne.s32.totalorder %s164, %s178
      %p180 = scmp.eq.s32.totalorder %s26, 0
      %p181 = por %p179, %p180
      %s183 = sadd.s32 %s182, 1
      %p186 = scmp.eq.s32.totalorder %s20, 2
      %p187 = scmp.ne.s32.totalorder %s182, %s184
      %p188 = scmp.eq.s32.totalorder %s20, 0
      %p189 = por %p187, %p188
      %p190 = scmp.ne.s32.totalorder %s182, %s184
      %p191 = scmp.eq.s32.totalorder %s25, 2
      %p192 = por %p190, %p191
      %p193 = scmp.ne.s32.totalorder %s184, %s185
      %p194 = scmp.eq.s32.totalorder %s25, 0
      %p195 = por %p193, %p194
      %p196 = scmp.ne.s32.totalorder %s184, %s185
      %p197 = scmp.eq.s32.totalorder %s26, 2
      %p198 = por %p196, %p197
      %p200 = scmp.ne.s32.totalorder %s185, %s199
      %p201 = scmp.eq.s32.totalorder %s26, 0
      %p202 = por %p200, %p201
      %s204 = sadd.s32 %s203, 1
      %p207 = scmp.eq.s32.totalorder %s20, 2
      %p208 = scmp.ne.s32.totalorder %s203, %s205
      %p209 = scmp.eq.s32.totalorder %s20, 0
      %p210 = por %p208, %p209
      %p211 = scmp.ne.s32.totalorder %s203, %s205
      %p212 = scmp.eq.s32.totalorder %s25, 2
      %p213 = por %p211, %p212
      %p214 = scmp.ne.s32.totalorder %s205, %s206
      %p215 = scmp.eq.s32.totalorder %s25, 0
      %p216 = por %p214, %p215
      %p217 = scmp.ne.s32.totalorder %s205, %s206
      %p218 = scmp.eq.s32.totalorder %s26, 2
      %p219 = por %p217, %p218
      %p221 = scmp.ne.s32.totalorder %s206, %s220
      %p222 = scmp.eq.s32.totalorder %s26, 0
      %p223 = por %p221, %p222
      %s225 = sadd.s32 %s224, 1
      %p228 = scmp.eq.s32.totalorder %s20, 2
      %p229 = scmp.ne.s32.totalorder %s224, %s226
      %p230 = scmp.eq.s32.totalorder %s20, 0
      %p231 = por %p229, %p230
      %p232 = scmp.ne.s32.totalorder %s224, %s226
      %p233 = scmp.eq.s32.totalorder %s25, 2
      %p234 = por %p232, %p233
      %p235 = scmp.ne.s32.totalorder %s226, %s227
      %p236 = scmp.eq.s32.totalorder %s25, 0
      %p237 = por %p235, %p236
      %p238 = scmp.ne.s32.totalorder %s226, %s227
      %p239 = scmp.eq.s32.totalorder %s26, 2
      %p240 = por %p238, %p239
      %p242 = scmp.ne.s32.totalorder %s227, %s241
      %p243 = scmp.eq.s32.totalorder %s26, 0
      %p244 = por %p242, %p243
      %p245 = scmp.le.s32.totalorder 1, %s20
      %p246 = scmp.lt.s32.totalorder %s20, 4
      %p247 = pnand %p245, %p246
      %p248 = pneg %p247
      // Predicated region
      $region9: #{tpu_custom_call.1} parent=5 // pred_check
        _
      $region10: #{tpu_custom_call.1} parent=5 // pred_check_branch
        %250 = sbr.rel (%p247) target = $region12
      $region11: #{tpu_custom_call.1} parent=5 // pred_region
        %s251 = ssub.s32 %s20, 1
        // Predicated region
        $region13: #{tpu_custom_call.1} parent=11 // pred_check
          %p252 = pneg %p41
        $region14: #{tpu_custom_call.1} parent=11 // pred_check_branch
          %254 = sbr.rel (%p252) target = $region16
        $region15: #{tpu_custom_call.1} parent=11 // pred_region
          %s256 = ssub.s32 16, 16
          %257 = vsyncadd [#allocation4], %s256
          %s259 = sshll.u32 [#allocation3], 4
          %s260 = int_to_ptr.vmem [resolvable:$true] %s259
          %262 = dma.hbm_to_vmem [thread:$0]  %s0, 16, %s260, [#allocation4]
        $region16: #{tpu_custom_call.1} parent=11 // pred_fallthru
          _
        // Predicated region
        $region17: #{tpu_custom_call.1} parent=11 // pred_check
          %p263 = pneg %p62
        $region18: #{tpu_custom_call.1} parent=11 // pred_check_branch
          %265 = sbr.rel (%p263) target = $region20
        $region19: #{tpu_custom_call.1} parent=11 // pred_region
          %s267 = ssub.s32 16, 16
          %268 = vsyncadd [#allocation7], %s267
          %s270 = sshll.u32 [#allocation6], 4
          %s271 = int_to_ptr.vmem [resolvable:$true] %s270
          %273 = dma.hbm_to_vmem [thread:$0]  %s1, 16, %s271, [#allocation7]
        $region20: #{tpu_custom_call.1} parent=11 // pred_fallthru
          _
        // Predicated region
        $region21: #{tpu_custom_call.1} parent=11 // pred_check
          %p274 = pneg %p153
        $region22: #{tpu_custom_call.1} parent=11 // pred_check_branch
          %276 = sbr.rel (%p274) target = $region24
        $region23: #{tpu_custom_call.1} parent=11 // pred_region
          %s278 = ssub.s32 64, 64
          %279 = vsyncadd [#allocation7], %s278
          %s281 = sshll.u32 [#allocation10], 4
          %s282 = int_to_ptr.vmem [resolvable:$true] %s281
          %284 = dma.hbm_to_vmem [thread:$0]  %s4, 64, %s282, [#allocation7]
        $region24: #{tpu_custom_call.1} parent=11 // pred_fallthru
          _
        // Predicated region
        $region25: #{tpu_custom_call.1} parent=11 // pred_check
          %p285 = pneg %p174
        $region26: #{tpu_custom_call.1} parent=11 // pred_check_branch
          %287 = sbr.rel (%p285) target = $region28
        $region27: #{tpu_custom_call.1} parent=11 // pred_region
          %s289 = ssub.s32 16, 16
          %290 = vsyncadd [#allocation12], %s289
          %s292 = sshll.u32 [#allocation11], 4
          %s293 = int_to_ptr.vmem [resolvable:$true] %s292
          %295 = dma.hbm_to_vmem [thread:$0]  %s5, 16, %s293, [#allocation12]
        $region28: #{tpu_custom_call.1} parent=11 // pred_fallthru
          _
        // Predicated region
        $region29: #{tpu_custom_call.1} parent=11 // pred_check
          %p296 = pneg %p195
        $region30: #{tpu_custom_call.1} parent=11 // pred_check_branch
          %298 = sbr.rel (%p296) target = $region32
        $region31: #{tpu_custom_call.1} parent=11 // pred_region
          %s300 = ssub.s32 16, 16
          %301 = vsyncadd [#allocation12], %s300
          %s303 = sshll.u32 [#allocation13], 4
          %s304 = int_to_ptr.vmem [resolvable:$true] %s303
          %306 = dma.hbm_to_vmem [thread:$0]  %s6, 16, %s304, [#allocation12]
        $region32: #{tpu_custom_call.1} parent=11 // pred_fallthru
          _
      $region12: #{tpu_custom_call.1} parent=5 // pred_fallthru
        _
      %p307 = scmp.lt.s32.totalorder %s20, 3
      // Predicated region
      $region33: #{tpu_custom_call.1} parent=5 // pred_check
        %p308 = pneg %p307
      $region34: #{tpu_custom_call.1} parent=5 // pred_check_branch
        %310 = sbr.rel (%p308) target = $region36
      $region35: #{tpu_custom_call.1} parent=5 // pred_region
        // Predicated region
        $region37: #{tpu_custom_call.1} parent=35 // pred_check
          %p311 = pneg %p90
        $region38: #{tpu_custom_call.1} parent=35 // pred_check_branch
          %313 = sbr.rel (%p311) target = $region40
        $region39: #{tpu_custom_call.1} parent=35 // pred_region
          %s314 = sand.u32 %s20, 1
          %s315 = scalar_lea.sflag [#allocation4], %s314
          %s316 = sand.u32 %s80, 1
          %s317 = smul.addr %s316, 4096
          %s318 = scalar_lea.vmem [#allocation8], %s317
          %p319 = scmp.gt.s32.totalorder %s20, 0
          %s320 = scalar_select %p319, %s20, 0
          %p321 = scmp.lt.s32.totalorder %s320, 1
          %s322 = scalar_select %p321, %s320, 1
          %s323 = smul.u32 512, %s322
          %s325 = ssub.s32 65536, 65536
          %326 = vsyncadd %s315, %s325
          %s327 = smul.addr %s323, 128
          %s328 = scalar_lea.hbm %s2, %s327
          %s329 = sshll.u32 %s318, 4
          %s330 = int_to_ptr.vmem [resolvable:$true] %s329
          %335 = dma.hbm_to_vmem [thread:$0]  %s328, 65536, %s330, %s315, 128, 128, 8
        $region40: #{tpu_custom_call.1} parent=35 // pred_fallthru
          _
        // Predicated region
        $region41: #{tpu_custom_call.1} parent=35 // pred_check
          %p336 = pneg %p126
        $region42: #{tpu_custom_call.1} parent=35 // pred_check_branch
          %338 = sbr.rel (%p336) target = $region44
        $region43: #{tpu_custom_call.1} parent=35 // pred_region
          %s339 = sand.u32 %s20, 1
          %s340 = scalar_lea.sflag [#allocation4], %s339
          %s341 = sand.u32 %s116, 1
          %s342 = smul.addr %s341, 512
          %s343 = scalar_lea.vmem [#allocation9], %s342
          %s344 = ssub.s32 %s20, 2
          %p345 = scmp.gt.s32.totalorder %s344, 0
          %s346 = scalar_select %p345, %s344, 0
          %p347 = scmp.lt.s32.totalorder %s346, 0
          %s348 = scalar_select %p347, %s346, 0
          %s349 = smul.u32 128, %s348
          %s351 = ssub.s32 8192, 8192
          %352 = vsyncadd %s340, %s351
          %s353 = smul.addr %s349, 64
          %s354 = scalar_lea.hbm %s3, %s353
          %s355 = sshll.u32 %s343, 4
          %s356 = int_to_ptr.vmem [resolvable:$true] %s355
          %361 = dma.hbm_to_vmem [thread:$0]  %s354, 8192, %s356, %s340, 64, 64, 4
        $region44: #{tpu_custom_call.1} parent=35 // pred_fallthru
          _
      $region36: #{tpu_custom_call.1} parent=5 // pred_fallthru
        _
      %p362 = scmp.le.s32.totalorder 1, %s20
      %p363 = scmp.lt.s32.totalorder %s20, 4
      %p364 = pnand %p362, %p363
      %p365 = pneg %p364
      // Predicated region
      $region45: #{tpu_custom_call.1} parent=5 // pred_check
        _
      $region46: #{tpu_custom_call.1} parent=5 // pred_check_branch
        %367 = sbr.rel (%p364) target = $region48
      $region47: #{tpu_custom_call.1} parent=5 // pred_region
        %s368 = ssub.s32 %s20, 1
        // Predicated region
        $region49: #{tpu_custom_call.1} parent=47 // pred_check
          %p369 = pneg %p41
        $region50: #{tpu_custom_call.1} parent=47 // pred_check_branch
          %371 = sbr.rel (%p369) target = $region52
        $region51: #{tpu_custom_call.1} parent=47 // pred_region
          %372 = dma.done [#allocation4], 16
        $region52: #{tpu_custom_call.1} parent=47 // pred_fallthru
          _
        // Predicated region
        $region53: #{tpu_custom_call.1} parent=47 // pred_check
          %p373 = pneg %p62
        $region54: #{tpu_custom_call.1} parent=47 // pred_check_branch
          %375 = sbr.rel (%p373) target = $region56
        $region55: #{tpu_custom_call.1} parent=47 // pred_region
          %376 = dma.done [#allocation7], 16
        $region56: #{tpu_custom_call.1} parent=47 // pred_fallthru
          _
        %s377 = sand.u32 %s25, 1
        %s378 = scalar_lea.sflag [#allocation4], %s377
        %s379 = sand.u32 %s83, 1
        %s380 = smul.addr %s379, 4096
        %s381 = scalar_lea.vmem [#allocation8], %s380
        // Predicated region
        $region57: #{tpu_custom_call.1} parent=47 // pred_check
          %p382 = pneg %p96
        $region58: #{tpu_custom_call.1} parent=47 // pred_check_branch
          %384 = sbr.rel (%p382) target = $region60
        $region59: #{tpu_custom_call.1} parent=47 // pred_region
          %385 = dma.done %s378, 65536
        $region60: #{tpu_custom_call.1} parent=47 // pred_fallthru
          _
        %s386 = sand.u32 %s25, 1
        %s387 = scalar_lea.sflag [#allocation4], %s386
        %s388 = sand.u32 %s119, 1
        %s389 = smul.addr %s388, 512
        %s390 = scalar_lea.vmem [#allocation9], %s389
        // Predicated region
        $region61: #{tpu_custom_call.1} parent=47 // pred_check
          %p391 = pneg %p132
        $region62: #{tpu_custom_call.1} parent=47 // pred_check_branch
          %393 = sbr.rel (%p391) target = $region64
        $region63: #{tpu_custom_call.1} parent=47 // pred_region
          %394 = dma.done %s387, 8192
        $region64: #{tpu_custom_call.1} parent=47 // pred_fallthru
          _
        // Predicated region
        $region65: #{tpu_custom_call.1} parent=47 // pred_check
          %p395 = pneg %p153
        $region66: #{tpu_custom_call.1} parent=47 // pred_check_branch
          %397 = sbr.rel (%p395) target = $region68
        $region67: #{tpu_custom_call.1} parent=47 // pred_region
          %398 = dma.done [#allocation7], 64
        $region68: #{tpu_custom_call.1} parent=47 // pred_fallthru
          _
        // Predicated region
        $region69: #{tpu_custom_call.1} parent=47 // pred_check
          %p399 = pneg %p174
        $region70: #{tpu_custom_call.1} parent=47 // pred_check_branch
          %401 = sbr.rel (%p399) target = $region72
        $region71: #{tpu_custom_call.1} parent=47 // pred_region
          %402 = dma.done [#allocation12], 16
        $region72: #{tpu_custom_call.1} parent=47 // pred_fallthru
          _
        // Predicated region
        $region73: #{tpu_custom_call.1} parent=47 // pred_check
          %p403 = pneg %p195
        $region74: #{tpu_custom_call.1} parent=47 // pred_check_branch
          %405 = sbr.rel (%p403) target = $region76
        $region75: #{tpu_custom_call.1} parent=47 // pred_region
          %406 = dma.done [#allocation12], 16
        $region76: #{tpu_custom_call.1} parent=47 // pred_fallthru
          _
        %p407 = pneg %p41
        %p408 = pneg %p38
        %p409 = pneg %p62
        %p410 = pneg %p59
        %s411 = sand.u32 %s25, 1
        %s412 = scalar_lea.sflag [#allocation4], %s411
        %s413 = sand.u32 %s83, 1
        %s414 = smul.addr %s413, 4096
        %s415 = scalar_lea.vmem [#allocation8], %s414
        %p416 = pneg %p96
        %p417 = pneg %p93
        %s418 = sand.u32 %s25, 1
        %s419 = scalar_lea.sflag [#allocation4], %s418
        %s420 = sand.u32 %s119, 1
        %s421 = smul.addr %s420, 512
        %s422 = scalar_lea.vmem [#allocation9], %s421
        %p423 = pneg %p132
        %p424 = pneg %p129
        %p425 = pneg %p153
        %p426 = pneg %p150
        %p427 = pneg %p174
        %p428 = pneg %p171
        %p429 = pneg %p195
        %p430 = pneg %p192
        %p431 = pneg %p216
        %p432 = pneg %p213
        %p433 = pneg %p237
        %p434 = pneg %p234
        %p435 = scmp.gt.s32.totalorder %s25, 0
        %s436 = scalar_select %p435, %s25, 0
        %p437 = scmp.lt.s32.totalorder %s436, 1
        %s438 = scalar_select %p437, %s436, 1
        %s439 = smul.u32 512, %s438
        %s440 = ssub.s32 %s25, 2
        %p441 = scmp.gt.s32.totalorder %s440, 0
        %s442 = scalar_select %p441, %s440, 0
        %p443 = scmp.lt.s32.totalorder %s442, 0
        %s444 = scalar_select %p443, %s442, 0
        %s445 = smul.u32 128, %s444
        %p446 = scmp.eq.s32.totalorder %s25, 0
        // Predicated region
        $region77: #{tpu_custom_call.1} parent=47 // pred_check
          %p447 = pneg %p446
        $region78: #{tpu_custom_call.1} parent=47 // pred_check_branch
          %449 = sbr.rel (%p447) target = $region80
        $region79: #{tpu_custom_call.1} parent=47 // pred_region
          %450 = vst [vmem:[#allocation2] sm:$0xff] 0.0
        $region80: #{tpu_custom_call.1} parent=47 // pred_fallthru
          _
        %p451 = scmp.ge.s32.totalorder %s25, 0
        %p452 = scmp.lt.s32.totalorder %s25, 2
        %p453 = pnand %p451, %p452
        %p454 = pneg %p453
        // Predicated region
        $region81: #{tpu_custom_call.1} parent=47 // pred_check
          _
        $region82: #{tpu_custom_call.1} parent=47 // pred_check_branch
          %456 = sbr.rel (%p453) target = $region84
        $region83: #{tpu_custom_call.1} parent=47 // pred_region
          %v457 = vld [vmem:[%s381] sm:$0xff]
          %v458 = vld [vmem:[%s381 + $0x8] sm:$0xff]
          %v459 = vld [vmem:[%s381 + $0x10] sm:$0xff]
          %v460 = vld [vmem:[%s381 + $0x18] sm:$0xff]
          %v461 = vld [vmem:[%s381 + $0x20] sm:$0xff]
          %v462 = vld [vmem:[%s381 + $0x28] sm:$0xff]
          %v463 = vld [vmem:[%s381 + $0x30] sm:$0xff]
          %v464 = vld [vmem:[%s381 + $0x38] sm:$0xff]
          %v465 = vld [vmem:[%s381 + $0x40] sm:$0xff]
          %v466 = vld [vmem:[%s381 + $0x48] sm:$0xff]
          %v467 = vld [vmem:[%s381 + $0x50] sm:$0xff]
          %v468 = vld [vmem:[%s381 + $0x58] sm:$0xff]
          %v469 = vld [vmem:[%s381 + $0x60] sm:$0xff]
          %v470 = vld [vmem:[%s381 + $0x68] sm:$0xff]
          %v471 = vld [vmem:[%s381 + $0x70] sm:$0xff]
          %v472 = vld [vmem:[%s381 + $0x78] sm:$0xff]
          %v473 = vld [vmem:[%s381 + $0x80] sm:$0xff]
          %v474 = vld [vmem:[%s381 + $0x88] sm:$0xff]
          %v475 = vld [vmem:[%s381 + $0x90] sm:$0xff]
          %v476 = vld [vmem:[%s381 + $0x98] sm:$0xff]
          %v477 = vld [vmem:[%s381 + $0xa0] sm:$0xff]
          %v478 = vld [vmem:[%s381 + $0xa8] sm:$0xff]
          %v479 = vld [vmem:[%s381 + $0xb0] sm:$0xff]
          %v480 = vld [vmem:[%s381 + $0xb8] sm:$0xff]
          %v481 = vld [vmem:[%s381 + $0xc0] sm:$0xff]
          %v482 = vld [vmem:[%s381 + $0xc8] sm:$0xff]
          %v483 = vld [vmem:[%s381 + $0xd0] sm:$0xff]
          %v484 = vld [vmem:[%s381 + $0xd8] sm:$0xff]
          %v485 = vld [vmem:[%s381 + $0xe0] sm:$0xff]
          %v486 = vld [vmem:[%s381 + $0xe8] sm:$0xff]
          %v487 = vld [vmem:[%s381 + $0xf0] sm:$0xff]
          %v488 = vld [vmem:[%s381 + $0xf8] sm:$0xff]
          %v489 = vld [vmem:[%s381 + $0x100] sm:$0xff]
          %v490 = vld [vmem:[%s381 + $0x108] sm:$0xff]
          %v491 = vld [vmem:[%s381 + $0x110] sm:$0xff]
          %v492 = vld [vmem:[%s381 + $0x118] sm:$0xff]
          %v493 = vld [vmem:[%s381 + $0x120] sm:$0xff]
          %v494 = vld [vmem:[%s381 + $0x128] sm:$0xff]
          %v495 = vld [vmem:[%s381 + $0x130] sm:$0xff]
          %v496 = vld [vmem:[%s381 + $0x138] sm:$0xff]
          %v497 = vld [vmem:[%s381 + $0x140] sm:$0xff]
          %v498 = vld [vmem:[%s381 + $0x148] sm:$0xff]
          %v499 = vld [vmem:[%s381 + $0x150] sm:$0xff]
          %v500 = vld [vmem:[%s381 + $0x158] sm:$0xff]
          %v501 = vld [vmem:[%s381 + $0x160] sm:$0xff]
          %v502 = vld [vmem:[%s381 + $0x168] sm:$0xff]
          %v503 = vld [vmem:[%s381 + $0x170] sm:$0xff]
          %v504 = vld [vmem:[%s381 + $0x178] sm:$0xff]
          %v505 = vld [vmem:[%s381 + $0x180] sm:$0xff]
          %v506 = vld [vmem:[%s381 + $0x188] sm:$0xff]
          %v507 = vld [vmem:[%s381 + $0x190] sm:$0xff]
          %v508 = vld [vmem:[%s381 + $0x198] sm:$0xff]
          %v509 = vld [vmem:[%s381 + $0x1a0] sm:$0xff]
          %v510 = vld [vmem:[%s381 + $0x1a8] sm:$0xff]
          %v511 = vld [vmem:[%s381 + $0x1b0] sm:$0xff]
          %v512 = vld [vmem:[%s381 + $0x1b8] sm:$0xff]
          %v513 = vld [vmem:[%s381 + $0x1c0] sm:$0xff]
          %v514 = vld [vmem:[%s381 + $0x1c8] sm:$0xff]
          %v515 = vld [vmem:[%s381 + $0x1d0] sm:$0xff]
          %v516 = vld [vmem:[%s381 + $0x1d8] sm:$0xff]
          %v517 = vld [vmem:[%s381 + $0x1e0] sm:$0xff]
          %v518 = vld [vmem:[%s381 + $0x1e8] sm:$0xff]
          %v519 = vld [vmem:[%s381 + $0x1f0] sm:$0xff]
          %v520 = vld [vmem:[%s381 + $0x1f8] sm:$0xff]
          %v521 = vld [vmem:[%s381 + $0x200] sm:$0xff]
          %v522 = vld [vmem:[%s381 + $0x208] sm:$0xff]
          %v523 = vld [vmem:[%s381 + $0x210] sm:$0xff]
          %v524 = vld [vmem:[%s381 + $0x218] sm:$0xff]
          %v525 = vld [vmem:[%s381 + $0x220] sm:$0xff]
          %v526 = vld [vmem:[%s381 + $0x228] sm:$0xff]
          %v527 = vld [vmem:[%s381 + $0x230] sm:$0xff]
          %v528 = vld [vmem:[%s381 + $0x238] sm:$0xff]
          %v529 = vld [vmem:[%s381 + $0x240] sm:$0xff]
          %v530 = vld [vmem:[%s381 + $0x248] sm:$0xff]
          %v531 = vld [vmem:[%s381 + $0x250] sm:$0xff]
          %v532 = vld [vmem:[%s381 + $0x258] sm:$0xff]
          %v533 = vld [vmem:[%s381 + $0x260] sm:$0xff]
          %v534 = vld [vmem:[%s381 + $0x268] sm:$0xff]
          %v535 = vld [vmem:[%s381 + $0x270] sm:$0xff]
          %v536 = vld [vmem:[%s381 + $0x278] sm:$0xff]
          %v537 = vld [vmem:[%s381 + $0x280] sm:$0xff]
          %v538 = vld [vmem:[%s381 + $0x288] sm:$0xff]
          %v539 = vld [vmem:[%s381 + $0x290] sm:$0xff]
          %v540 = vld [vmem:[%s381 + $0x298] sm:$0xff]
          %v541 = vld [vmem:[%s381 + $0x2a0] sm:$0xff]
          %v542 = vld [vmem:[%s381 + $0x2a8] sm:$0xff]
          %v543 = vld [vmem:[%s381 + $0x2b0] sm:$0xff]
          %v544 = vld [vmem:[%s381 + $0x2b8] sm:$0xff]
          %v545 = vld [vmem:[%s381 + $0x2c0] sm:$0xff]
          %v546 = vld [vmem:[%s381 + $0x2c8] sm:$0xff]
          %v547 = vld [vmem:[%s381 + $0x2d0] sm:$0xff]
          %v548 = vld [vmem:[%s381 + $0x2d8] sm:$0xff]
          %v549 = vld [vmem:[%s381 + $0x2e0] sm:$0xff]
          %v550 = vld [vmem:[%s381 + $0x2e8] sm:$0xff]
          %v551 = vld [vmem:[%s381 + $0x2f0] sm:$0xff]
          %v552 = vld [vmem:[%s381 + $0x2f8] sm:$0xff]
          %v553 = vld [vmem:[%s381 + $0x300] sm:$0xff]
          %v554 = vld [vmem:[%s381 + $0x308] sm:$0xff]
          %v555 = vld [vmem:[%s381 + $0x310] sm:$0xff]
          %v556 = vld [vmem:[%s381 + $0x318] sm:$0xff]
          %v557 = vld [vmem:[%s381 + $0x320] sm:$0xff]
          %v558 = vld [vmem:[%s381 + $0x328] sm:$0xff]
          %v559 = vld [vmem:[%s381 + $0x330] sm:$0xff]
          %v560 = vld [vmem:[%s381 + $0x338] sm:$0xff]
          %v561 = vld [vmem:[%s381 + $0x340] sm:$0xff]
          %v562 = vld [vmem:[%s381 + $0x348] sm:$0xff]
          %v563 = vld [vmem:[%s381 + $0x350] sm:$0xff]
          %v564 = vld [vmem:[%s381 + $0x358] sm:$0xff]
          %v565 = vld [vmem:[%s381 + $0x360] sm:$0xff]
          %v566 = vld [vmem:[%s381 + $0x368] sm:$0xff]
          %v567 = vld [vmem:[%s381 + $0x370] sm:$0xff]
          %v568 = vld [vmem:[%s381 + $0x378] sm:$0xff]
          %v569 = vld [vmem:[%s381 + $0x380] sm:$0xff]
          %v570 = vld [vmem:[%s381 + $0x388] sm:$0xff]
          %v571 = vld [vmem:[%s381 + $0x390] sm:$0xff]
          %v572 = vld [vmem:[%s381 + $0x398] sm:$0xff]
          %v573 = vld [vmem:[%s381 + $0x3a0] sm:$0xff]
          %v574 = vld [vmem:[%s381 + $0x3a8] sm:$0xff]
          %v575 = vld [vmem:[%s381 + $0x3b0] sm:$0xff]
          %v576 = vld [vmem:[%s381 + $0x3b8] sm:$0xff]
          %v577 = vld [vmem:[%s381 + $0x3c0] sm:$0xff]
          %v578 = vld [vmem:[%s381 + $0x3c8] sm:$0xff]
          %v579 = vld [vmem:[%s381 + $0x3d0] sm:$0xff]
          %v580 = vld [vmem:[%s381 + $0x3d8] sm:$0xff]
          %v581 = vld [vmem:[%s381 + $0x3e0] sm:$0xff]
          %v582 = vld [vmem:[%s381 + $0x3e8] sm:$0xff]
          %v583 = vld [vmem:[%s381 + $0x3f0] sm:$0xff]
          %v584 = vld [vmem:[%s381 + $0x3f8] sm:$0xff]
          %v585 = vld [vmem:[%s381 + $0x400] sm:$0xff]
          %v586 = vld [vmem:[%s381 + $0x408] sm:$0xff]
          %v587 = vld [vmem:[%s381 + $0x410] sm:$0xff]
          %v588 = vld [vmem:[%s381 + $0x418] sm:$0xff]
          %v589 = vld [vmem:[%s381 + $0x420] sm:$0xff]
          %v590 = vld [vmem:[%s381 + $0x428] sm:$0xff]
          %v591 = vld [vmem:[%s381 + $0x430] sm:$0xff]
          %v592 = vld [vmem:[%s381 + $0x438] sm:$0xff]
          %v593 = vld [vmem:[%s381 + $0x440] sm:$0xff]
          %v594 = vld [vmem:[%s381 + $0x448] sm:$0xff]
          %v595 = vld [vmem:[%s381 + $0x450] sm:$0xff]
          %v596 = vld [vmem:[%s381 + $0x458] sm:$0xff]
          %v597 = vld [vmem:[%s381 + $0x460] sm:$0xff]
          %v598 = vld [vmem:[%s381 + $0x468] sm:$0xff]
          %v599 = vld [vmem:[%s381 + $0x470] sm:$0xff]
          %v600 = vld [vmem:[%s381 + $0x478] sm:$0xff]
          %v601 = vld [vmem:[%s381 + $0x480] sm:$0xff]
          %v602 = vld [vmem:[%s381 + $0x488] sm:$0xff]
          %v603 = vld [vmem:[%s381 + $0x490] sm:$0xff]
          %v604 = vld [vmem:[%s381 + $0x498] sm:$0xff]
          %v605 = vld [vmem:[%s381 + $0x4a0] sm:$0xff]
          %v606 = vld [vmem:[%s381 + $0x4a8] sm:$0xff]
          %v607 = vld [vmem:[%s381 + $0x4b0] sm:$0xff]
          %v608 = vld [vmem:[%s381 + $0x4b8] sm:$0xff]
          %v609 = vld [vmem:[%s381 + $0x4c0] sm:$0xff]
          %v610 = vld [vmem:[%s381 + $0x4c8] sm:$0xff]
          %v611 = vld [vmem:[%s381 + $0x4d0] sm:$0xff]
          %v612 = vld [vmem:[%s381 + $0x4d8] sm:$0xff]
          %v613 = vld [vmem:[%s381 + $0x4e0] sm:$0xff]
          %v614 = vld [vmem:[%s381 + $0x4e8] sm:$0xff]
          %v615 = vld [vmem:[%s381 + $0x4f0] sm:$0xff]
          %v616 = vld [vmem:[%s381 + $0x4f8] sm:$0xff]
          %v617 = vld [vmem:[%s381 + $0x500] sm:$0xff]
          %v618 = vld [vmem:[%s381 + $0x508] sm:$0xff]
          %v619 = vld [vmem:[%s381 + $0x510] sm:$0xff]
          %v620 = vld [vmem:[%s381 + $0x518] sm:$0xff]
          %v621 = vld [vmem:[%s381 + $0x520] sm:$0xff]
          %v622 = vld [vmem:[%s381 + $0x528] sm:$0xff]
          %v623 = vld [vmem:[%s381 + $0x530] sm:$0xff]
          %v624 = vld [vmem:[%s381 + $0x538] sm:$0xff]
          %v625 = vld [vmem:[%s381 + $0x540] sm:$0xff]
          %v626 = vld [vmem:[%s381 + $0x548] sm:$0xff]
          %v627 = vld [vmem:[%s381 + $0x550] sm:$0xff]
          %v628 = vld [vmem:[%s381 + $0x558] sm:$0xff]
          %v629 = vld [vmem:[%s381 + $0x560] sm:$0xff]
          %v630 = vld [vmem:[%s381 + $0x568] sm:$0xff]
          %v631 = vld [vmem:[%s381 + $0x570] sm:$0xff]
          %v632 = vld [vmem:[%s381 + $0x578] sm:$0xff]
          %v633 = vld [vmem:[%s381 + $0x580] sm:$0xff]
          %v634 = vld [vmem:[%s381 + $0x588] sm:$0xff]
          %v635 = vld [vmem:[%s381 + $0x590] sm:$0xff]
          %v636 = vld [vmem:[%s381 + $0x598] sm:$0xff]
          %v637 = vld [vmem:[%s381 + $0x5a0] sm:$0xff]
          %v638 = vld [vmem:[%s381 + $0x5a8] sm:$0xff]
          %v639 = vld [vmem:[%s381 + $0x5b0] sm:$0xff]
          %v640 = vld [vmem:[%s381 + $0x5b8] sm:$0xff]
          %v641 = vld [vmem:[%s381 + $0x5c0] sm:$0xff]
          %v642 = vld [vmem:[%s381 + $0x5c8] sm:$0xff]
          %v643 = vld [vmem:[%s381 + $0x5d0] sm:$0xff]
          %v644 = vld [vmem:[%s381 + $0x5d8] sm:$0xff]
          %v645 = vld [vmem:[%s381 + $0x5e0] sm:$0xff]
          %v646 = vld [vmem:[%s381 + $0x5e8] sm:$0xff]
          %v647 = vld [vmem:[%s381 + $0x5f0] sm:$0xff]
          %v648 = vld [vmem:[%s381 + $0x5f8] sm:$0xff]
          %v649 = vld [vmem:[%s381 + $0x600] sm:$0xff]
          %v650 = vld [vmem:[%s381 + $0x608] sm:$0xff]
          %v651 = vld [vmem:[%s381 + $0x610] sm:$0xff]
          %v652 = vld [vmem:[%s381 + $0x618] sm:$0xff]
          %v653 = vld [vmem:[%s381 + $0x620] sm:$0xff]
          %v654 = vld [vmem:[%s381 + $0x628] sm:$0xff]
          %v655 = vld [vmem:[%s381 + $0x630] sm:$0xff]
          %v656 = vld [vmem:[%s381 + $0x638] sm:$0xff]
          %v657 = vld [vmem:[%s381 + $0x640] sm:$0xff]
          %v658 = vld [vmem:[%s381 + $0x648] sm:$0xff]
          %v659 = vld [vmem:[%s381 + $0x650] sm:$0xff]
          %v660 = vld [vmem:[%s381 + $0x658] sm:$0xff]
          %v661 = vld [vmem:[%s381 + $0x660] sm:$0xff]
          %v662 = vld [vmem:[%s381 + $0x668] sm:$0xff]
          %v663 = vld [vmem:[%s381 + $0x670] sm:$0xff]
          %v664 = vld [vmem:[%s381 + $0x678] sm:$0xff]
          %v665 = vld [vmem:[%s381 + $0x680] sm:$0xff]
          %v666 = vld [vmem:[%s381 + $0x688] sm:$0xff]
          %v667 = vld [vmem:[%s381 + $0x690] sm:$0xff]
          %v668 = vld [vmem:[%s381 + $0x698] sm:$0xff]
          %v669 = vld [vmem:[%s381 + $0x6a0] sm:$0xff]
          %v670 = vld [vmem:[%s381 + $0x6a8] sm:$0xff]
          %v671 = vld [vmem:[%s381 + $0x6b0] sm:$0xff]
          %v672 = vld [vmem:[%s381 + $0x6b8] sm:$0xff]
          %v673 = vld [vmem:[%s381 + $0x6c0] sm:$0xff]
          %v674 = vld [vmem:[%s381 + $0x6c8] sm:$0xff]
          %v675 = vld [vmem:[%s381 + $0x6d0] sm:$0xff]
          %v676 = vld [vmem:[%s381 + $0x6d8] sm:$0xff]
          %v677 = vld [vmem:[%s381 + $0x6e0] sm:$0xff]
          %v678 = vld [vmem:[%s381 + $0x6e8] sm:$0xff]
          %v679 = vld [vmem:[%s381 + $0x6f0] sm:$0xff]
          %v680 = vld [vmem:[%s381 + $0x6f8] sm:$0xff]
          %v681 = vld [vmem:[%s381 + $0x700] sm:$0xff]
          %v682 = vld [vmem:[%s381 + $0x708] sm:$0xff]
          %v683 = vld [vmem:[%s381 + $0x710] sm:$0xff]
          %v684 = vld [vmem:[%s381 + $0x718] sm:$0xff]
          %v685 = vld [vmem:[%s381 + $0x720] sm:$0xff]
          %v686 = vld [vmem:[%s381 + $0x728] sm:$0xff]
          %v687 = vld [vmem:[%s381 + $0x730] sm:$0xff]
          %v688 = vld [vmem:[%s381 + $0x738] sm:$0xff]
          %v689 = vld [vmem:[%s381 + $0x740] sm:$0xff]
          %v690 = vld [vmem:[%s381 + $0x748] sm:$0xff]
          %v691 = vld [vmem:[%s381 + $0x750] sm:$0xff]
          %v692 = vld [vmem:[%s381 + $0x758] sm:$0xff]
          %v693 = vld [vmem:[%s381 + $0x760] sm:$0xff]
          %v694 = vld [vmem:[%s381 + $0x768] sm:$0xff]
          %v695 = vld [vmem:[%s381 + $0x770] sm:$0xff]
          %v696 = vld [vmem:[%s381 + $0x778] sm:$0xff]
          %v697 = vld [vmem:[%s381 + $0x780] sm:$0xff]
          %v698 = vld [vmem:[%s381 + $0x788] sm:$0xff]
          %v699 = vld [vmem:[%s381 + $0x790] sm:$0xff]
          %v700 = vld [vmem:[%s381 + $0x798] sm:$0xff]
          %v701 = vld [vmem:[%s381 + $0x7a0] sm:$0xff]
          %v702 = vld [vmem:[%s381 + $0x7a8] sm:$0xff]
          %v703 = vld [vmem:[%s381 + $0x7b0] sm:$0xff]
          %v704 = vld [vmem:[%s381 + $0x7b8] sm:$0xff]
          %v705 = vld [vmem:[%s381 + $0x7c0] sm:$0xff]
          %v706 = vld [vmem:[%s381 + $0x7c8] sm:$0xff]
          %v707 = vld [vmem:[%s381 + $0x7d0] sm:$0xff]
          %v708 = vld [vmem:[%s381 + $0x7d8] sm:$0xff]
          %v709 = vld [vmem:[%s381 + $0x7e0] sm:$0xff]
          %v710 = vld [vmem:[%s381 + $0x7e8] sm:$0xff]
          %v711 = vld [vmem:[%s381 + $0x7f0] sm:$0xff]
          %v712 = vld [vmem:[%s381 + $0x7f8] sm:$0xff]
          %v713 = vld [vmem:[%s381 + $0x800] sm:$0xff]
          %v714 = vld [vmem:[%s381 + $0x808] sm:$0xff]
          %v715 = vld [vmem:[%s381 + $0x810] sm:$0xff]
          %v716 = vld [vmem:[%s381 + $0x818] sm:$0xff]
          %v717 = vld [vmem:[%s381 + $0x820] sm:$0xff]
          %v718 = vld [vmem:[%s381 + $0x828] sm:$0xff]
          %v719 = vld [vmem:[%s381 + $0x830] sm:$0xff]
          %v720 = vld [vmem:[%s381 + $0x838] sm:$0xff]
          %v721 = vld [vmem:[%s381 + $0x840] sm:$0xff]
          %v722 = vld [vmem:[%s381 + $0x848] sm:$0xff]
          %v723 = vld [vmem:[%s381 + $0x850] sm:$0xff]
          %v724 = vld [vmem:[%s381 + $0x858] sm:$0xff]
          %v725 = vld [vmem:[%s381 + $0x860] sm:$0xff]
          %v726 = vld [vmem:[%s381 + $0x868] sm:$0xff]
          %v727 = vld [vmem:[%s381 + $0x870] sm:$0xff]
          %v728 = vld [vmem:[%s381 + $0x878] sm:$0xff]
          %v729 = vld [vmem:[%s381 + $0x880] sm:$0xff]
          %v730 = vld [vmem:[%s381 + $0x888] sm:$0xff]
          %v731 = vld [vmem:[%s381 + $0x890] sm:$0xff]
          %v732 = vld [vmem:[%s381 + $0x898] sm:$0xff]
          %v733 = vld [vmem:[%s381 + $0x8a0] sm:$0xff]
          %v734 = vld [vmem:[%s381 + $0x8a8] sm:$0xff]
          %v735 = vld [vmem:[%s381 + $0x8b0] sm:$0xff]
          %v736 = vld [vmem:[%s381 + $0x8b8] sm:$0xff]
          %v737 = vld [vmem:[%s381 + $0x8c0] sm:$0xff]
          %v738 = vld [vmem:[%s381 + $0x8c8] sm:$0xff]
          %v739 = vld [vmem:[%s381 + $0x8d0] sm:$0xff]
          %v740 = vld [vmem:[%s381 + $0x8d8] sm:$0xff]
          %v741 = vld [vmem:[%s381 + $0x8e0] sm:$0xff]
          %v742 = vld [vmem:[%s381 + $0x8e8] sm:$0xff]
          %v743 = vld [vmem:[%s381 + $0x8f0] sm:$0xff]
          %v744 = vld [vmem:[%s381 + $0x8f8] sm:$0xff]
          %v745 = vld [vmem:[%s381 + $0x900] sm:$0xff]
          %v746 = vld [vmem:[%s381 + $0x908] sm:$0xff]
          %v747 = vld [vmem:[%s381 + $0x910] sm:$0xff]
          %v748 = vld [vmem:[%s381 + $0x918] sm:$0xff]
          %v749 = vld [vmem:[%s381 + $0x920] sm:$0xff]
          %v750 = vld [vmem:[%s381 + $0x928] sm:$0xff]
          %v751 = vld [vmem:[%s381 + $0x930] sm:$0xff]
          %v752 = vld [vmem:[%s381 + $0x938] sm:$0xff]
          %v753 = vld [vmem:[%s381 + $0x940] sm:$0xff]
          %v754 = vld [vmem:[%s381 + $0x948] sm:$0xff]
          %v755 = vld [vmem:[%s381 + $0x950] sm:$0xff]
          %v756 = vld [vmem:[%s381 + $0x958] sm:$0xff]
          %v757 = vld [vmem:[%s381 + $0x960] sm:$0xff]
          %v758 = vld [vmem:[%s381 + $0x968] sm:$0xff]
          %v759 = vld [vmem:[%s381 + $0x970] sm:$0xff]
          %v760 = vld [vmem:[%s381 + $0x978] sm:$0xff]
          %v761 = vld [vmem:[%s381 + $0x980] sm:$0xff]
          %v762 = vld [vmem:[%s381 + $0x988] sm:$0xff]
          %v763 = vld [vmem:[%s381 + $0x990] sm:$0xff]
          %v764 = vld [vmem:[%s381 + $0x998] sm:$0xff]
          %v765 = vld [vmem:[%s381 + $0x9a0] sm:$0xff]
          %v766 = vld [vmem:[%s381 + $0x9a8] sm:$0xff]
          %v767 = vld [vmem:[%s381 + $0x9b0] sm:$0xff]
          %v768 = vld [vmem:[%s381 + $0x9b8] sm:$0xff]
          %v769 = vld [vmem:[%s381 + $0x9c0] sm:$0xff]
          %v770 = vld [vmem:[%s381 + $0x9c8] sm:$0xff]
          %v771 = vld [vmem:[%s381 + $0x9d0] sm:$0xff]
          %v772 = vld [vmem:[%s381 + $0x9d8] sm:$0xff]
          %v773 = vld [vmem:[%s381 + $0x9e0] sm:$0xff]
          %v774 = vld [vmem:[%s381 + $0x9e8] sm:$0xff]
          %v775 = vld [vmem:[%s381 + $0x9f0] sm:$0xff]
          %v776 = vld [vmem:[%s381 + $0x9f8] sm:$0xff]
          %v777 = vld [vmem:[%s381 + $0xa00] sm:$0xff]
          %v778 = vld [vmem:[%s381 + $0xa08] sm:$0xff]
          %v779 = vld [vmem:[%s381 + $0xa10] sm:$0xff]
          %v780 = vld [vmem:[%s381 + $0xa18] sm:$0xff]
          %v781 = vld [vmem:[%s381 + $0xa20] sm:$0xff]
          %v782 = vld [vmem:[%s381 + $0xa28] sm:$0xff]
          %v783 = vld [vmem:[%s381 + $0xa30] sm:$0xff]
          %v784 = vld [vmem:[%s381 + $0xa38] sm:$0xff]
          %v785 = vld [vmem:[%s381 + $0xa40] sm:$0xff]
          %v786 = vld [vmem:[%s381 + $0xa48] sm:$0xff]
          %v787 = vld [vmem:[%s381 + $0xa50] sm:$0xff]
          %v788 = vld [vmem:[%s381 + $0xa58] sm:$0xff]
          %v789 = vld [vmem:[%s381 + $0xa60] sm:$0xff]
          %v790 = vld [vmem:[%s381 + $0xa68] sm:$0xff]
          %v791 = vld [vmem:[%s381 + $0xa70] sm:$0xff]
          %v792 = vld [vmem:[%s381 + $0xa78] sm:$0xff]
          %v793 = vld [vmem:[%s381 + $0xa80] sm:$0xff]
          %v794 = vld [vmem:[%s381 + $0xa88] sm:$0xff]
          %v795 = vld [vmem:[%s381 + $0xa90] sm:$0xff]
          %v796 = vld [vmem:[%s381 + $0xa98] sm:$0xff]
          %v797 = vld [vmem:[%s381 + $0xaa0] sm:$0xff]
          %v798 = vld [vmem:[%s381 + $0xaa8] sm:$0xff]
          %v799 = vld [vmem:[%s381 + $0xab0] sm:$0xff]
          %v800 = vld [vmem:[%s381 + $0xab8] sm:$0xff]
          %v801 = vld [vmem:[%s381 + $0xac0] sm:$0xff]
          %v802 = vld [vmem:[%s381 + $0xac8] sm:$0xff]
          %v803 = vld [vmem:[%s381 + $0xad0] sm:$0xff]
          %v804 = vld [vmem:[%s381 + $0xad8] sm:$0xff]
          %v805 = vld [vmem:[%s381 + $0xae0] sm:$0xff]
          %v806 = vld [vmem:[%s381 + $0xae8] sm:$0xff]
          %v807 = vld [vmem:[%s381 + $0xaf0] sm:$0xff]
          %v808 = vld [vmem:[%s381 + $0xaf8] sm:$0xff]
          %v809 = vld [vmem:[%s381 + $0xb00] sm:$0xff]
          %v810 = vld [vmem:[%s381 + $0xb08] sm:$0xff]
          %v811 = vld [vmem:[%s381 + $0xb10] sm:$0xff]
          %v812 = vld [vmem:[%s381 + $0xb18] sm:$0xff]
          %v813 = vld [vmem:[%s381 + $0xb20] sm:$0xff]
          %v814 = vld [vmem:[%s381 + $0xb28] sm:$0xff]
          %v815 = vld [vmem:[%s381 + $0xb30] sm:$0xff]
          %v816 = vld [vmem:[%s381 + $0xb38] sm:$0xff]
          %v817 = vld [vmem:[%s381 + $0xb40] sm:$0xff]
          %v818 = vld [vmem:[%s381 + $0xb48] sm:$0xff]
          %v819 = vld [vmem:[%s381 + $0xb50] sm:$0xff]
          %v820 = vld [vmem:[%s381 + $0xb58] sm:$0xff]
          %v821 = vld [vmem:[%s381 + $0xb60] sm:$0xff]
          %v822 = vld [vmem:[%s381 + $0xb68] sm:$0xff]
          %v823 = vld [vmem:[%s381 + $0xb70] sm:$0xff]
          %v824 = vld [vmem:[%s381 + $0xb78] sm:$0xff]
          %v825 = vld [vmem:[%s381 + $0xb80] sm:$0xff]
          %v826 = vld [vmem:[%s381 + $0xb88] sm:$0xff]
          %v827 = vld [vmem:[%s381 + $0xb90] sm:$0xff]
          %v828 = vld [vmem:[%s381 + $0xb98] sm:$0xff]
          %v829 = vld [vmem:[%s381 + $0xba0] sm:$0xff]
          %v830 = vld [vmem:[%s381 + $0xba8] sm:$0xff]
          %v831 = vld [vmem:[%s381 + $0xbb0] sm:$0xff]
          %v832 = vld [vmem:[%s381 + $0xbb8] sm:$0xff]
          %v833 = vld [vmem:[%s381 + $0xbc0] sm:$0xff]
          %v834 = vld [vmem:[%s381 + $0xbc8] sm:$0xff]
          %v835 = vld [vmem:[%s381 + $0xbd0] sm:$0xff]
          %v836 = vld [vmem:[%s381 + $0xbd8] sm:$0xff]
          %v837 = vld [vmem:[%s381 + $0xbe0] sm:$0xff]
          %v838 = vld [vmem:[%s381 + $0xbe8] sm:$0xff]
          %v839 = vld [vmem:[%s381 + $0xbf0] sm:$0xff]
          %v840 = vld [vmem:[%s381 + $0xbf8] sm:$0xff]
          %v841 = vld [vmem:[%s381 + $0xc00] sm:$0xff]
          %v842 = vld [vmem:[%s381 + $0xc08] sm:$0xff]
          %v843 = vld [vmem:[%s381 + $0xc10] sm:$0xff]
          %v844 = vld [vmem:[%s381 + $0xc18] sm:$0xff]
          %v845 = vld [vmem:[%s381 + $0xc20] sm:$0xff]
          %v846 = vld [vmem:[%s381 + $0xc28] sm:$0xff]
          %v847 = vld [vmem:[%s381 + $0xc30] sm:$0xff]
          %v848 = vld [vmem:[%s381 + $0xc38] sm:$0xff]
          %v849 = vld [vmem:[%s381 + $0xc40] sm:$0xff]
          %v850 = vld [vmem:[%s381 + $0xc48] sm:$0xff]
          %v851 = vld [vmem:[%s381 + $0xc50] sm:$0xff]
          %v852 = vld [vmem:[%s381 + $0xc58] sm:$0xff]
          %v853 = vld [vmem:[%s381 + $0xc60] sm:$0xff]
          %v854 = vld [vmem:[%s381 + $0xc68] sm:$0xff]
          %v855 = vld [vmem:[%s381 + $0xc70] sm:$0xff]
          %v856 = vld [vmem:[%s381 + $0xc78] sm:$0xff]
          %v857 = vld [vmem:[%s381 + $0xc80] sm:$0xff]
          %v858 = vld [vmem:[%s381 + $0xc88] sm:$0xff]
          %v859 = vld [vmem:[%s381 + $0xc90] sm:$0xff]
          %v860 = vld [vmem:[%s381 + $0xc98] sm:$0xff]
          %v861 = vld [vmem:[%s381 + $0xca0] sm:$0xff]
          %v862 = vld [vmem:[%s381 + $0xca8] sm:$0xff]
          %v863 = vld [vmem:[%s381 + $0xcb0] sm:$0xff]
          %v864 = vld [vmem:[%s381 + $0xcb8] sm:$0xff]
          %v865 = vld [vmem:[%s381 + $0xcc0] sm:$0xff]
          %v866 = vld [vmem:[%s381 + $0xcc8] sm:$0xff]
          %v867 = vld [vmem:[%s381 + $0xcd0] sm:$0xff]
          %v868 = vld [vmem:[%s381 + $0xcd8] sm:$0xff]
          %v869 = vld [vmem:[%s381 + $0xce0] sm:$0xff]
          %v870 = vld [vmem:[%s381 + $0xce8] sm:$0xff]
          %v871 = vld [vmem:[%s381 + $0xcf0] sm:$0xff]
          %v872 = vld [vmem:[%s381 + $0xcf8] sm:$0xff]
          %v873 = vld [vmem:[%s381 + $0xd00] sm:$0xff]
          %v874 = vld [vmem:[%s381 + $0xd08] sm:$0xff]
          %v875 = vld [vmem:[%s381 + $0xd10] sm:$0xff]
          %v876 = vld [vmem:[%s381 + $0xd18] sm:$0xff]
          %v877 = vld [vmem:[%s381 + $0xd20] sm:$0xff]
          %v878 = vld [vmem:[%s381 + $0xd28] sm:$0xff]
          %v879 = vld [vmem:[%s381 + $0xd30] sm:$0xff]
          %v880 = vld [vmem:[%s381 + $0xd38] sm:$0xff]
          %v881 = vld [vmem:[%s381 + $0xd40] sm:$0xff]
          %v882 = vld [vmem:[%s381 + $0xd48] sm:$0xff]
          %v883 = vld [vmem:[%s381 + $0xd50] sm:$0xff]
          %v884 = vld [vmem:[%s381 + $0xd58] sm:$0xff]
          %v885 = vld [vmem:[%s381 + $0xd60] sm:$0xff]
          %v886 = vld [vmem:[%s381 + $0xd68] sm:$0xff]
          %v887 = vld [vmem:[%s381 + $0xd70] sm:$0xff]
          %v888 = vld [vmem:[%s381 + $0xd78] sm:$0xff]
          %v889 = vld [vmem:[%s381 + $0xd80] sm:$0xff]
          %v890 = vld [vmem:[%s381 + $0xd88] sm:$0xff]
          %v891 = vld [vmem:[%s381 + $0xd90] sm:$0xff]
          %v892 = vld [vmem:[%s381 + $0xd98] sm:$0xff]
          %v893 = vld [vmem:[%s381 + $0xda0] sm:$0xff]
          %v894 = vld [vmem:[%s381 + $0xda8] sm:$0xff]
          %v895 = vld [vmem:[%s381 + $0xdb0] sm:$0xff]
          %v896 = vld [vmem:[%s381 + $0xdb8] sm:$0xff]
          %v897 = vld [vmem:[%s381 + $0xdc0] sm:$0xff]
          %v898 = vld [vmem:[%s381 + $0xdc8] sm:$0xff]
          %v899 = vld [vmem:[%s381 + $0xdd0] sm:$0xff]
          %v900 = vld [vmem:[%s381 + $0xdd8] sm:$0xff]
          %v901 = vld [vmem:[%s381 + $0xde0] sm:$0xff]
          %v902 = vld [vmem:[%s381 + $0xde8] sm:$0xff]
          %v903 = vld [vmem:[%s381 + $0xdf0] sm:$0xff]
          %v904 = vld [vmem:[%s381 + $0xdf8] sm:$0xff]
          %v905 = vld [vmem:[%s381 + $0xe00] sm:$0xff]
          %v906 = vld [vmem:[%s381 + $0xe08] sm:$0xff]
          %v907 = vld [vmem:[%s381 + $0xe10] sm:$0xff]
          %v908 = vld [vmem:[%s381 + $0xe18] sm:$0xff]
          %v909 = vld [vmem:[%s381 + $0xe20] sm:$0xff]
          %v910 = vld [vmem:[%s381 + $0xe28] sm:$0xff]
          %v911 = vld [vmem:[%s381 + $0xe30] sm:$0xff]
          %v912 = vld [vmem:[%s381 + $0xe38] sm:$0xff]
          %v913 = vld [vmem:[%s381 + $0xe40] sm:$0xff]
          %v914 = vld [vmem:[%s381 + $0xe48] sm:$0xff]
          %v915 = vld [vmem:[%s381 + $0xe50] sm:$0xff]
          %v916 = vld [vmem:[%s381 + $0xe58] sm:$0xff]
          %v917 = vld [vmem:[%s381 + $0xe60] sm:$0xff]
          %v918 = vld [vmem:[%s381 + $0xe68] sm:$0xff]
          %v919 = vld [vmem:[%s381 + $0xe70] sm:$0xff]
          %v920 = vld [vmem:[%s381 + $0xe78] sm:$0xff]
          %v921 = vld [vmem:[%s381 + $0xe80] sm:$0xff]
          %v922 = vld [vmem:[%s381 + $0xe88] sm:$0xff]
          %v923 = vld [vmem:[%s381 + $0xe90] sm:$0xff]
          %v924 = vld [vmem:[%s381 + $0xe98] sm:$0xff]
          %v925 = vld [vmem:[%s381 + $0xea0] sm:$0xff]
          %v926 = vld [vmem:[%s381 + $0xea8] sm:$0xff]
          %v927 = vld [vmem:[%s381 + $0xeb0] sm:$0xff]
          %v928 = vld [vmem:[%s381 + $0xeb8] sm:$0xff]
          %v929 = vld [vmem:[%s381 + $0xec0] sm:$0xff]
          %v930 = vld [vmem:[%s381 + $0xec8] sm:$0xff]
          %v931 = vld [vmem:[%s381 + $0xed0] sm:$0xff]
          %v932 = vld [vmem:[%s381 + $0xed8] sm:$0xff]
          %v933 = vld [vmem:[%s381 + $0xee0] sm:$0xff]
          %v934 = vld [vmem:[%s381 + $0xee8] sm:$0xff]
          %v935 = vld [vmem:[%s381 + $0xef0] sm:$0xff]
          %v936 = vld [vmem:[%s381 + $0xef8] sm:$0xff]
          %v937 = vld [vmem:[%s381 + $0xf00] sm:$0xff]
          %v938 = vld [vmem:[%s381 + $0xf08] sm:$0xff]
          %v939 = vld [vmem:[%s381 + $0xf10] sm:$0xff]
          %v940 = vld [vmem:[%s381 + $0xf18] sm:$0xff]
          %v941 = vld [vmem:[%s381 + $0xf20] sm:$0xff]
          %v942 = vld [vmem:[%s381 + $0xf28] sm:$0xff]
          %v943 = vld [vmem:[%s381 + $0xf30] sm:$0xff]
          %v944 = vld [vmem:[%s381 + $0xf38] sm:$0xff]
          %v945 = vld [vmem:[%s381 + $0xf40] sm:$0xff]
          %v946 = vld [vmem:[%s381 + $0xf48] sm:$0xff]
          %v947 = vld [vmem:[%s381 + $0xf50] sm:$0xff]
          %v948 = vld [vmem:[%s381 + $0xf58] sm:$0xff]
          %v949 = vld [vmem:[%s381 + $0xf60] sm:$0xff]
          %v950 = vld [vmem:[%s381 + $0xf68] sm:$0xff]
          %v951 = vld [vmem:[%s381 + $0xf70] sm:$0xff]
          %v952 = vld [vmem:[%s381 + $0xf78] sm:$0xff]
          %v953 = vld [vmem:[%s381 + $0xf80] sm:$0xff]
          %v954 = vld [vmem:[%s381 + $0xf88] sm:$0xff]
          %v955 = vld [vmem:[%s381 + $0xf90] sm:$0xff]
          %v956 = vld [vmem:[%s381 + $0xf98] sm:$0xff]
          %v957 = vld [vmem:[%s381 + $0xfa0] sm:$0xff]
          %v958 = vld [vmem:[%s381 + $0xfa8] sm:$0xff]
          %v959 = vld [vmem:[%s381 + $0xfb0] sm:$0xff]
          %v960 = vld [vmem:[%s381 + $0xfb8] sm:$0xff]
          %v961 = vld [vmem:[%s381 + $0xfc0] sm:$0xff]
          %v962 = vld [vmem:[%s381 + $0xfc8] sm:$0xff]
          %v963 = vld [vmem:[%s381 + $0xfd0] sm:$0xff]
          %v964 = vld [vmem:[%s381 + $0xfd8] sm:$0xff]
          %v965 = vld [vmem:[%s381 + $0xfe0] sm:$0xff]
          %v966 = vld [vmem:[%s381 + $0xfe8] sm:$0xff]
          %v967 = vld [vmem:[%s381 + $0xff0] sm:$0xff]
          %v968 = vld [vmem:[%s381 + $0xff8] sm:$0xff]
          %v969 = vmul.f32 %v457, %v457
          %v970 = vmul.f32 %v458, %v458
          %v971 = vmul.f32 %v459, %v459
          %v972 = vmul.f32 %v460, %v460
          %v973 = vmul.f32 %v461, %v461
          %v974 = vmul.f32 %v462, %v462
          %v975 = vmul.f32 %v463, %v463
          %v976 = vmul.f32 %v464, %v464
          %v977 = vmul.f32 %v465, %v465
          %v978 = vmul.f32 %v466, %v466
          %v979 = vmul.f32 %v467, %v467
          %v980 = vmul.f32 %v468, %v468
          %v981 = vmul.f32 %v469, %v469
          %v982 = vmul.f32 %v470, %v470
          %v983 = vmul.f32 %v471, %v471
          %v984 = vmul.f32 %v472, %v472
          %v985 = vmul.f32 %v473, %v473
          %v986 = vmul.f32 %v474, %v474
          %v987 = vmul.f32 %v475, %v475
          %v988 = vmul.f32 %v476, %v476
          %v989 = vmul.f32 %v477, %v477
          %v990 = vmul.f32 %v478, %v478
          %v991 = vmul.f32 %v479, %v479
          %v992 = vmul.f32 %v480, %v480
          %v993 = vmul.f32 %v481, %v481
          %v994 = vmul.f32 %v482, %v482
          %v995 = vmul.f32 %v483, %v483
          %v996 = vmul.f32 %v484, %v484
          %v997 = vmul.f32 %v485, %v485
          %v998 = vmul.f32 %v486, %v486
          %v999 = vmul.f32 %v487, %v487
          %v1000 = vmul.f32 %v488, %v488
          %v1001 = vmul.f32 %v489, %v489
          %v1002 = vmul.f32 %v490, %v490
          %v1003 = vmul.f32 %v491, %v491
          %v1004 = vmul.f32 %v492, %v492
          %v1005 = vmul.f32 %v493, %v493
          %v1006 = vmul.f32 %v494, %v494
          %v1007 = vmul.f32 %v495, %v495
          %v1008 = vmul.f32 %v496, %v496
          %v1009 = vmul.f32 %v497, %v497
          %v1010 = vmul.f32 %v498, %v498
          %v1011 = vmul.f32 %v499, %v499
          %v1012 = vmul.f32 %v500, %v500
          %v1013 = vmul.f32 %v501, %v501
          %v1014 = vmul.f32 %v502, %v502
          %v1015 = vmul.f32 %v503, %v503
          %v1016 = vmul.f32 %v504, %v504
          %v1017 = vmul.f32 %v505, %v505
          %v1018 = vmul.f32 %v506, %v506
          %v1019 = vmul.f32 %v507, %v507
          %v1020 = vmul.f32 %v508, %v508
          %v1021 = vmul.f32 %v509, %v509
          %v1022 = vmul.f32 %v510, %v510
          %v1023 = vmul.f32 %v511, %v511
          %v1024 = vmul.f32 %v512, %v512
          %v1025 = vmul.f32 %v513, %v513
          %v1026 = vmul.f32 %v514, %v514
          %v1027 = vmul.f32 %v515, %v515
          %v1028 = vmul.f32 %v516, %v516
          %v1029 = vmul.f32 %v517, %v517
          %v1030 = vmul.f32 %v518, %v518
          %v1031 = vmul.f32 %v519, %v519
          %v1032 = vmul.f32 %v520, %v520
          %v1033 = vmul.f32 %v521, %v521
          %v1034 = vmul.f32 %v522, %v522
          %v1035 = vmul.f32 %v523, %v523
          %v1036 = vmul.f32 %v524, %v524
          %v1037 = vmul.f32 %v525, %v525
          %v1038 = vmul.f32 %v526, %v526
          %v1039 = vmul.f32 %v527, %v527
          %v1040 = vmul.f32 %v528, %v528
          %v1041 = vmul.f32 %v529, %v529
          %v1042 = vmul.f32 %v530, %v530
          %v1043 = vmul.f32 %v531, %v531
          %v1044 = vmul.f32 %v532, %v532
          %v1045 = vmul.f32 %v533, %v533
          %v1046 = vmul.f32 %v534, %v534
          %v1047 = vmul.f32 %v535, %v535
          %v1048 = vmul.f32 %v536, %v536
          %v1049 = vmul.f32 %v537, %v537
          %v1050 = vmul.f32 %v538, %v538
          %v1051 = vmul.f32 %v539, %v539
          %v1052 = vmul.f32 %v540, %v540
          %v1053 = vmul.f32 %v541, %v541
          %v1054 = vmul.f32 %v542, %v542
          %v1055 = vmul.f32 %v543, %v543
          %v1056 = vmul.f32 %v544, %v544
          %v1057 = vmul.f32 %v545, %v545
          %v1058 = vmul.f32 %v546, %v546
          %v1059 = vmul.f32 %v547, %v547
          %v1060 = vmul.f32 %v548, %v548
          %v1061 = vmul.f32 %v549, %v549
          %v1062 = vmul.f32 %v550, %v550
          %v1063 = vmul.f32 %v551, %v551
          %v1064 = vmul.f32 %v552, %v552
          %v1065 = vmul.f32 %v553, %v553
          %v1066 = vmul.f32 %v554, %v554
          %v1067 = vmul.f32 %v555, %v555
          %v1068 = vmul.f32 %v556, %v556
          %v1069 = vmul.f32 %v557, %v557
          %v1070 = vmul.f32 %v558, %v558
          %v1071 = vmul.f32 %v559, %v559
          %v1072 = vmul.f32 %v560, %v560
          %v1073 = vmul.f32 %v561, %v561
          %v1074 = vmul.f32 %v562, %v562
          %v1075 = vmul.f32 %v563, %v563
          %v1076 = vmul.f32 %v564, %v564
          %v1077 = vmul.f32 %v565, %v565
          %v1078 = vmul.f32 %v566, %v566
          %v1079 = vmul.f32 %v567, %v567
          %v1080 = vmul.f32 %v568, %v568
          %v1081 = vmul.f32 %v569, %v569
          %v1082 = vmul.f32 %v570, %v570
          %v1083 = vmul.f32 %v571, %v571
          %v1084 = vmul.f32 %v572, %v572
          %v1085 = vmul.f32 %v573, %v573
          %v1086 = vmul.f32 %v574, %v574
          %v1087 = vmul.f32 %v575, %v575
          %v1088 = vmul.f32 %v576, %v576
          %v1089 = vmul.f32 %v577, %v577
          %v1090 = vmul.f32 %v578, %v578
          %v1091 = vmul.f32 %v579, %v579
          %v1092 = vmul.f32 %v580, %v580
          %v1093 = vmul.f32 %v581, %v581
          %v1094 = vmul.f32 %v582, %v582
          %v1095 = vmul.f32 %v583, %v583
          %v1096 = vmul.f32 %v584, %v584
          %v1097 = vmul.f32 %v585, %v585
          %v1098 = vmul.f32 %v586, %v586
          %v1099 = vmul.f32 %v587, %v587
          %v1100 = vmul.f32 %v588, %v588
          %v1101 = vmul.f32 %v589, %v589
          %v1102 = vmul.f32 %v590, %v590
          %v1103 = vmul.f32 %v591, %v591
          %v1104 = vmul.f32 %v592, %v592
          %v1105 = vmul.f32 %v593, %v593
          %v1106 = vmul.f32 %v594, %v594
          %v1107 = vmul.f32 %v595, %v595
          %v1108 = vmul.f32 %v596, %v596
          %v1109 = vmul.f32 %v597, %v597
          %v1110 = vmul.f32 %v598, %v598
          %v1111 = vmul.f32 %v599, %v599
          %v1112 = vmul.f32 %v600, %v600
          %v1113 = vmul.f32 %v601, %v601
          %v1114 = vmul.f32 %v602, %v602
          %v1115 = vmul.f32 %v603, %v603
          %v1116 = vmul.f32 %v604, %v604
          %v1117 = vmul.f32 %v605, %v605
          %v1118 = vmul.f32 %v606, %v606
          %v1119 = vmul.f32 %v607, %v607
          %v1120 = vmul.f32 %v608, %v608
          %v1121 = vmul.f32 %v609, %v609
          %v1122 = vmul.f32 %v610, %v610
          %v1123 = vmul.f32 %v611, %v611
          %v1124 = vmul.f32 %v612, %v612
          %v1125 = vmul.f32 %v613, %v613
          %v1126 = vmul.f32 %v614, %v614
          %v1127 = vmul.f32 %v615, %v615
          %v1128 = vmul.f32 %v616, %v616
          %v1129 = vmul.f32 %v617, %v617
          %v1130 = vmul.f32 %v618, %v618
          %v1131 = vmul.f32 %v619, %v619
          %v1132 = vmul.f32 %v620, %v620
          %v1133 = vmul.f32 %v621, %v621
          %v1134 = vmul.f32 %v622, %v622
          %v1135 = vmul.f32 %v623, %v623
          %v1136 = vmul.f32 %v624, %v624
          %v1137 = vmul.f32 %v625, %v625
          %v1138 = vmul.f32 %v626, %v626
          %v1139 = vmul.f32 %v627, %v627
          %v1140 = vmul.f32 %v628, %v628
          %v1141 = vmul.f32 %v629, %v629
          %v1142 = vmul.f32 %v630, %v630
          %v1143 = vmul.f32 %v631, %v631
          %v1144 = vmul.f32 %v632, %v632
          %v1145 = vmul.f32 %v633, %v633
          %v1146 = vmul.f32 %v634, %v634
          %v1147 = vmul.f32 %v635, %v635
          %v1148 = vmul.f32 %v636, %v636
          %v1149 = vmul.f32 %v637, %v637
          %v1150 = vmul.f32 %v638, %v638
          %v1151 = vmul.f32 %v639, %v639
          %v1152 = vmul.f32 %v640, %v640
          %v1153 = vmul.f32 %v641, %v641
          %v1154 = vmul.f32 %v642, %v642
          %v1155 = vmul.f32 %v643, %v643
          %v1156 = vmul.f32 %v644, %v644
          %v1157 = vmul.f32 %v645, %v645
          %v1158 = vmul.f32 %v646, %v646
          %v1159 = vmul.f32 %v647, %v647
          %v1160 = vmul.f32 %v648, %v648
          %v1161 = vmul.f32 %v649, %v649
          %v1162 = vmul.f32 %v650, %v650
          %v1163 = vmul.f32 %v651, %v651
          %v1164 = vmul.f32 %v652, %v652
          %v1165 = vmul.f32 %v653, %v653
          %v1166 = vmul.f32 %v654, %v654
          %v1167 = vmul.f32 %v655, %v655
          %v1168 = vmul.f32 %v656, %v656
          %v1169 = vmul.f32 %v657, %v657
          %v1170 = vmul.f32 %v658, %v658
          %v1171 = vmul.f32 %v659, %v659
          %v1172 = vmul.f32 %v660, %v660
          %v1173 = vmul.f32 %v661, %v661
          %v1174 = vmul.f32 %v662, %v662
          %v1175 = vmul.f32 %v663, %v663
          %v1176 = vmul.f32 %v664, %v664
          %v1177 = vmul.f32 %v665, %v665
          %v1178 = vmul.f32 %v666, %v666
          %v1179 = vmul.f32 %v667, %v667
          %v1180 = vmul.f32 %v668, %v668
          %v1181 = vmul.f32 %v669, %v669
          %v1182 = vmul.f32 %v670, %v670
          %v1183 = vmul.f32 %v671, %v671
          %v1184 = vmul.f32 %v672, %v672
          %v1185 = vmul.f32 %v673, %v673
          %v1186 = vmul.f32 %v674, %v674
          %v1187 = vmul.f32 %v675, %v675
          %v1188 = vmul.f32 %v676, %v676
          %v1189 = vmul.f32 %v677, %v677
          %v1190 = vmul.f32 %v678, %v678
          %v1191 = vmul.f32 %v679, %v679
          %v1192 = vmul.f32 %v680, %v680
          %v1193 = vmul.f32 %v681, %v681
          %v1194 = vmul.f32 %v682, %v682
          %v1195 = vmul.f32 %v683, %v683
          %v1196 = vmul.f32 %v684, %v684
          %v1197 = vmul.f32 %v685, %v685
          %v1198 = vmul.f32 %v686, %v686
          %v1199 = vmul.f32 %v687, %v687
          %v1200 = vmul.f32 %v688, %v688
          %v1201 = vmul.f32 %v689, %v689
          %v1202 = vmul.f32 %v690, %v690
          %v1203 = vmul.f32 %v691, %v691
          %v1204 = vmul.f32 %v692, %v692
          %v1205 = vmul.f32 %v693, %v693
          %v1206 = vmul.f32 %v694, %v694
          %v1207 = vmul.f32 %v695, %v695
          %v1208 = vmul.f32 %v696, %v696
          %v1209 = vmul.f32 %v697, %v697
          %v1210 = vmul.f32 %v698, %v698
          %v1211 = vmul.f32 %v699, %v699
          %v1212 = vmul.f32 %v700, %v700
          %v1213 = vmul.f32 %v701, %v701
          %v1214 = vmul.f32 %v702, %v702
          %v1215 = vmul.f32 %v703, %v703
          %v1216 = vmul.f32 %v704, %v704
          %v1217 = vmul.f32 %v705, %v705
          %v1218 = vmul.f32 %v706, %v706
          %v1219 = vmul.f32 %v707, %v707
          %v1220 = vmul.f32 %v708, %v708
          %v1221 = vmul.f32 %v709, %v709
          %v1222 = vmul.f32 %v710, %v710
          %v1223 = vmul.f32 %v711, %v711
          %v1224 = vmul.f32 %v712, %v712
          %v1225 = vmul.f32 %v713, %v713
          %v1226 = vmul.f32 %v714, %v714
          %v1227 = vmul.f32 %v715, %v715
          %v1228 = vmul.f32 %v716, %v716
          %v1229 = vmul.f32 %v717, %v717
          %v1230 = vmul.f32 %v718, %v718
          %v1231 = vmul.f32 %v719, %v719
          %v1232 = vmul.f32 %v720, %v720
          %v1233 = vmul.f32 %v721, %v721
          %v1234 = vmul.f32 %v722, %v722
          %v1235 = vmul.f32 %v723, %v723
          %v1236 = vmul.f32 %v724, %v724
          %v1237 = vmul.f32 %v725, %v725
          %v1238 = vmul.f32 %v726, %v726
          %v1239 = vmul.f32 %v727, %v727
          %v1240 = vmul.f32 %v728, %v728
          %v1241 = vmul.f32 %v729, %v729
          %v1242 = vmul.f32 %v730, %v730
          %v1243 = vmul.f32 %v731, %v731
          %v1244 = vmul.f32 %v732, %v732
          %v1245 = vmul.f32 %v733, %v733
          %v1246 = vmul.f32 %v734, %v734
          %v1247 = vmul.f32 %v735, %v735
          %v1248 = vmul.f32 %v736, %v736
          %v1249 = vmul.f32 %v737, %v737
          %v1250 = vmul.f32 %v738, %v738
          %v1251 = vmul.f32 %v739, %v739
          %v1252 = vmul.f32 %v740, %v740
          %v1253 = vmul.f32 %v741, %v741
          %v1254 = vmul.f32 %v742, %v742
          %v1255 = vmul.f32 %v743, %v743
          %v1256 = vmul.f32 %v744, %v744
          %v1257 = vmul.f32 %v745, %v745
          %v1258 = vmul.f32 %v746, %v746
          %v1259 = vmul.f32 %v747, %v747
          %v1260 = vmul.f32 %v748, %v748
          %v1261 = vmul.f32 %v749, %v749
          %v1262 = vmul.f32 %v750, %v750
          %v1263 = vmul.f32 %v751, %v751
          %v1264 = vmul.f32 %v752, %v752
          %v1265 = vmul.f32 %v753, %v753
          %v1266 = vmul.f32 %v754, %v754
          %v1267 = vmul.f32 %v755, %v755
          %v1268 = vmul.f32 %v756, %v756
          %v1269 = vmul.f32 %v757, %v757
          %v1270 = vmul.f32 %v758, %v758
          %v1271 = vmul.f32 %v759, %v759
          %v1272 = vmul.f32 %v760, %v760
          %v1273 = vmul.f32 %v761, %v761
          %v1274 = vmul.f32 %v762, %v762
          %v1275 = vmul.f32 %v763, %v763
          %v1276 = vmul.f32 %v764, %v764
          %v1277 = vmul.f32 %v765, %v765
          %v1278 = vmul.f32 %v766, %v766
          %v1279 = vmul.f32 %v767, %v767
          %v1280 = vmul.f32 %v768, %v768
          %v1281 = vmul.f32 %v769, %v769
          %v1282 = vmul.f32 %v770, %v770
          %v1283 = vmul.f32 %v771, %v771
          %v1284 = vmul.f32 %v772, %v772
          %v1285 = vmul.f32 %v773, %v773
          %v1286 = vmul.f32 %v774, %v774
          %v1287 = vmul.f32 %v775, %v775
          %v1288 = vmul.f32 %v776, %v776
          %v1289 = vmul.f32 %v777, %v777
          %v1290 = vmul.f32 %v778, %v778
          %v1291 = vmul.f32 %v779, %v779
          %v1292 = vmul.f32 %v780, %v780
          %v1293 = vmul.f32 %v781, %v781
          %v1294 = vmul.f32 %v782, %v782
          %v1295 = vmul.f32 %v783, %v783
          %v1296 = vmul.f32 %v784, %v784
          %v1297 = vmul.f32 %v785, %v785
          %v1298 = vmul.f32 %v786, %v786
          %v1299 = vmul.f32 %v787, %v787
          %v1300 = vmul.f32 %v788, %v788
          %v1301 = vmul.f32 %v789, %v789
          %v1302 = vmul.f32 %v790, %v790
          %v1303 = vmul.f32 %v791, %v791
          %v1304 = vmul.f32 %v792, %v792
          %v1305 = vmul.f32 %v793, %v793
          %v1306 = vmul.f32 %v794, %v794
          %v1307 = vmul.f32 %v795, %v795
          %v1308 = vmul.f32 %v796, %v796
          %v1309 = vmul.f32 %v797, %v797
          %v1310 = vmul.f32 %v798, %v798
          %v1311 = vmul.f32 %v799, %v799
          %v1312 = vmul.f32 %v800, %v800
          %v1313 = vmul.f32 %v801, %v801
          %v1314 = vmul.f32 %v802, %v802
          %v1315 = vmul.f32 %v803, %v803
          %v1316 = vmul.f32 %v804, %v804
          %v1317 = vmul.f32 %v805, %v805
          %v1318 = vmul.f32 %v806, %v806
          %v1319 = vmul.f32 %v807, %v807
          %v1320 = vmul.f32 %v808, %v808
          %v1321 = vmul.f32 %v809, %v809
          %v1322 = vmul.f32 %v810, %v810
          %v1323 = vmul.f32 %v811, %v811
          %v1324 = vmul.f32 %v812, %v812
          %v1325 = vmul.f32 %v813, %v813
          %v1326 = vmul.f32 %v814, %v814
          %v1327 = vmul.f32 %v815, %v815
          %v1328 = vmul.f32 %v816, %v816
          %v1329 = vmul.f32 %v817, %v817
          %v1330 = vmul.f32 %v818, %v818
          %v1331 = vmul.f32 %v819, %v819
          %v1332 = vmul.f32 %v820, %v820
          %v1333 = vmul.f32 %v821, %v821
          %v1334 = vmul.f32 %v822, %v822
          %v1335 = vmul.f32 %v823, %v823
          %v1336 = vmul.f32 %v824, %v824
          %v1337 = vmul.f32 %v825, %v825
          %v1338 = vmul.f32 %v826, %v826
          %v1339 = vmul.f32 %v827, %v827
          %v1340 = vmul.f32 %v828, %v828
          %v1341 = vmul.f32 %v829, %v829
          %v1342 = vmul.f32 %v830, %v830
          %v1343 = vmul.f32 %v831, %v831
          %v1344 = vmul.f32 %v832, %v832
          %v1345 = vmul.f32 %v833, %v833
          %v1346 = vmul.f32 %v834, %v834
          %v1347 = vmul.f32 %v835, %v835
          %v1348 = vmul.f32 %v836, %v836
          %v1349 = vmul.f32 %v837, %v837
          %v1350 = vmul.f32 %v838, %v838
          %v1351 = vmul.f32 %v839, %v839
          %v1352 = vmul.f32 %v840, %v840
          %v1353 = vmul.f32 %v841, %v841
          %v1354 = vmul.f32 %v842, %v842
          %v1355 = vmul.f32 %v843, %v843
          %v1356 = vmul.f32 %v844, %v844
          %v1357 = vmul.f32 %v845, %v845
          %v1358 = vmul.f32 %v846, %v846
          %v1359 = vmul.f32 %v847, %v847
          %v1360 = vmul.f32 %v848, %v848
          %v1361 = vmul.f32 %v849, %v849
          %v1362 = vmul.f32 %v850, %v850
          %v1363 = vmul.f32 %v851, %v851
          %v1364 = vmul.f32 %v852, %v852
          %v1365 = vmul.f32 %v853, %v853
          %v1366 = vmul.f32 %v854, %v854
          %v1367 = vmul.f32 %v855, %v855
          %v1368 = vmul.f32 %v856, %v856
          %v1369 = vmul.f32 %v857, %v857
          %v1370 = vmul.f32 %v858, %v858
          %v1371 = vmul.f32 %v859, %v859
          %v1372 = vmul.f32 %v860, %v860
          %v1373 = vmul.f32 %v861, %v861
          %v1374 = vmul.f32 %v862, %v862
          %v1375 = vmul.f32 %v863, %v863
          %v1376 = vmul.f32 %v864, %v864
          %v1377 = vmul.f32 %v865, %v865
          %v1378 = vmul.f32 %v866, %v866
          %v1379 = vmul.f32 %v867, %v867
          %v1380 = vmul.f32 %v868, %v868
          %v1381 = vmul.f32 %v869, %v869
          %v1382 = vmul.f32 %v870, %v870
          %v1383 = vmul.f32 %v871, %v871
          %v1384 = vmul.f32 %v872, %v872
          %v1385 = vmul.f32 %v873, %v873
          %v1386 = vmul.f32 %v874, %v874
          %v1387 = vmul.f32 %v875, %v875
          %v1388 = vmul.f32 %v876, %v876
          %v1389 = vmul.f32 %v877, %v877
          %v1390 = vmul.f32 %v878, %v878
          %v1391 = vmul.f32 %v879, %v879
          %v1392 = vmul.f32 %v880, %v880
          %v1393 = vmul.f32 %v881, %v881
          %v1394 = vmul.f32 %v882, %v882
          %v1395 = vmul.f32 %v883, %v883
          %v1396 = vmul.f32 %v884, %v884
          %v1397 = vmul.f32 %v885, %v885
          %v1398 = vmul.f32 %v886, %v886
          %v1399 = vmul.f32 %v887, %v887
          %v1400 = vmul.f32 %v888, %v888
          %v1401 = vmul.f32 %v889, %v889
          %v1402 = vmul.f32 %v890, %v890
          %v1403 = vmul.f32 %v891, %v891
          %v1404 = vmul.f32 %v892, %v892
          %v1405 = vmul.f32 %v893, %v893
          %v1406 = vmul.f32 %v894, %v894
          %v1407 = vmul.f32 %v895, %v895
          %v1408 = vmul.f32 %v896, %v896
          %v1409 = vmul.f32 %v897, %v897
          %v1410 = vmul.f32 %v898, %v898
          %v1411 = vmul.f32 %v899, %v899
          %v1412 = vmul.f32 %v900, %v900
          %v1413 = vmul.f32 %v901, %v901
          %v1414 = vmul.f32 %v902, %v902
          %v1415 = vmul.f32 %v903, %v903
          %v1416 = vmul.f32 %v904, %v904
          %v1417 = vmul.f32 %v905, %v905
          %v1418 = vmul.f32 %v906, %v906
          %v1419 = vmul.f32 %v907, %v907
          %v1420 = vmul.f32 %v908, %v908
          %v1421 = vmul.f32 %v909, %v909
          %v1422 = vmul.f32 %v910, %v910
          %v1423 = vmul.f32 %v911, %v911
          %v1424 = vmul.f32 %v912, %v912
          %v1425 = vmul.f32 %v913, %v913
          %v1426 = vmul.f32 %v914, %v914
          %v1427 = vmul.f32 %v915, %v915
          %v1428 = vmul.f32 %v916, %v916
          %v1429 = vmul.f32 %v917, %v917
          %v1430 = vmul.f32 %v918, %v918
          %v1431 = vmul.f32 %v919, %v919
          %v1432 = vmul.f32 %v920, %v920
          %v1433 = vmul.f32 %v921, %v921
          %v1434 = vmul.f32 %v922, %v922
          %v1435 = vmul.f32 %v923, %v923
          %v1436 = vmul.f32 %v924, %v924
          %v1437 = vmul.f32 %v925, %v925
          %v1438 = vmul.f32 %v926, %v926
          %v1439 = vmul.f32 %v927, %v927
          %v1440 = vmul.f32 %v928, %v928
          %v1441 = vmul.f32 %v929, %v929
          %v1442 = vmul.f32 %v930, %v930
          %v1443 = vmul.f32 %v931, %v931
          %v1444 = vmul.f32 %v932, %v932
          %v1445 = vmul.f32 %v933, %v933
          %v1446 = vmul.f32 %v934, %v934
          %v1447 = vmul.f32 %v935, %v935
          %v1448 = vmul.f32 %v936, %v936
          %v1449 = vmul.f32 %v937, %v937
          %v1450 = vmul.f32 %v938, %v938
          %v1451 = vmul.f32 %v939, %v939
          %v1452 = vmul.f32 %v940, %v940
          %v1453 = vmul.f32 %v941, %v941
          %v1454 = vmul.f32 %v942, %v942
          %v1455 = vmul.f32 %v943, %v943
          %v1456 = vmul.f32 %v944, %v944
          %v1457 = vmul.f32 %v945, %v945
          %v1458 = vmul.f32 %v946, %v946
          %v1459 = vmul.f32 %v947, %v947
          %v1460 = vmul.f32 %v948, %v948
          %v1461 = vmul.f32 %v949, %v949
          %v1462 = vmul.f32 %v950, %v950
          %v1463 = vmul.f32 %v951, %v951
          %v1464 = vmul.f32 %v952, %v952
          %v1465 = vmul.f32 %v953, %v953
          %v1466 = vmul.f32 %v954, %v954
          %v1467 = vmul.f32 %v955, %v955
          %v1468 = vmul.f32 %v956, %v956
          %v1469 = vmul.f32 %v957, %v957
          %v1470 = vmul.f32 %v958, %v958
          %v1471 = vmul.f32 %v959, %v959
          %v1472 = vmul.f32 %v960, %v960
          %v1473 = vmul.f32 %v961, %v961
          %v1474 = vmul.f32 %v962, %v962
          %v1475 = vmul.f32 %v963, %v963
          %v1476 = vmul.f32 %v964, %v964
          %v1477 = vmul.f32 %v965, %v965
          %v1478 = vmul.f32 %v966, %v966
          %v1479 = vmul.f32 %v967, %v967
          %v1480 = vmul.f32 %v968, %v968
          %v1481 = vld [vmem:[#allocation2] sm:$0xff]
          %v1482 = vadd.f32 %v969, %v970
          %v1483 = vadd.f32 %v1482, %v971
          %v1484 = vadd.f32 %v1483, %v972
          %v1485 = vadd.f32 %v1484, %v973
          %v1486 = vadd.f32 %v1485, %v974
          %v1487 = vadd.f32 %v1486, %v975
          %v1488 = vadd.f32 %v1487, %v976
          %v1489 = vadd.f32 %v1488, %v977
          %v1490 = vadd.f32 %v1489, %v978
          %v1491 = vadd.f32 %v1490, %v979
          %v1492 = vadd.f32 %v1491, %v980
          %v1493 = vadd.f32 %v1492, %v981
          %v1494 = vadd.f32 %v1493, %v982
          %v1495 = vadd.f32 %v1494, %v983
          %v1496 = vadd.f32 %v1495, %v984
          %v1497 = vadd.f32 %v1496, %v985
          %v1498 = vadd.f32 %v1497, %v986
          %v1499 = vadd.f32 %v1498, %v987
          %v1500 = vadd.f32 %v1499, %v988
          %v1501 = vadd.f32 %v1500, %v989
          %v1502 = vadd.f32 %v1501, %v990
          %v1503 = vadd.f32 %v1502, %v991
          %v1504 = vadd.f32 %v1503, %v992
          %v1505 = vadd.f32 %v1504, %v993
          %v1506 = vadd.f32 %v1505, %v994
          %v1507 = vadd.f32 %v1506, %v995
          %v1508 = vadd.f32 %v1507, %v996
          %v1509 = vadd.f32 %v1508, %v997
          %v1510 = vadd.f32 %v1509, %v998
          %v1511 = vadd.f32 %v1510, %v999
          %v1512 = vadd.f32 %v1511, %v1000
          %v1513 = vadd.f32 %v1512, %v1001
          %v1514 = vadd.f32 %v1513, %v1002
          %v1515 = vadd.f32 %v1514, %v1003
          %v1516 = vadd.f32 %v1515, %v1004
          %v1517 = vadd.f32 %v1516, %v1005
          %v1518 = vadd.f32 %v1517, %v1006
          %v1519 = vadd.f32 %v1518, %v1007
          %v1520 = vadd.f32 %v1519, %v1008
          %v1521 = vadd.f32 %v1520, %v1009
          %v1522 = vadd.f32 %v1521, %v1010
          %v1523 = vadd.f32 %v1522, %v1011
          %v1524 = vadd.f32 %v1523, %v1012
          %v1525 = vadd.f32 %v1524, %v1013
          %v1526 = vadd.f32 %v1525, %v1014
          %v1527 = vadd.f32 %v1526, %v1015
          %v1528 = vadd.f32 %v1527, %v1016
          %v1529 = vadd.f32 %v1528, %v1017
          %v1530 = vadd.f32 %v1529, %v1018
          %v1531 = vadd.f32 %v1530, %v1019
          %v1532 = vadd.f32 %v1531, %v1020
          %v1533 = vadd.f32 %v1532, %v1021
          %v1534 = vadd.f32 %v1533, %v1022
          %v1535 = vadd.f32 %v1534, %v1023
          %v1536 = vadd.f32 %v1535, %v1024
          %v1537 = vadd.f32 %v1536, %v1025
          %v1538 = vadd.f32 %v1537, %v1026
          %v1539 = vadd.f32 %v1538, %v1027
          %v1540 = vadd.f32 %v1539, %v1028
          %v1541 = vadd.f32 %v1540, %v1029
          %v1542 = vadd.f32 %v1541, %v1030
          %v1543 = vadd.f32 %v1542, %v1031
          %v1544 = vadd.f32 %v1543, %v1032
          %v1545 = vadd.f32 %v1544, %v1033
          %v1546 = vadd.f32 %v1545, %v1034
          %v1547 = vadd.f32 %v1546, %v1035
          %v1548 = vadd.f32 %v1547, %v1036
          %v1549 = vadd.f32 %v1548, %v1037
          %v1550 = vadd.f32 %v1549, %v1038
          %v1551 = vadd.f32 %v1550, %v1039
          %v1552 = vadd.f32 %v1551, %v1040
          %v1553 = vadd.f32 %v1552, %v1041
          %v1554 = vadd.f32 %v1553, %v1042
          %v1555 = vadd.f32 %v1554, %v1043
          %v1556 = vadd.f32 %v1555, %v1044
          %v1557 = vadd.f32 %v1556, %v1045
          %v1558 = vadd.f32 %v1557, %v1046
          %v1559 = vadd.f32 %v1558, %v1047
          %v1560 = vadd.f32 %v1559, %v1048
          %v1561 = vadd.f32 %v1560, %v1049
          %v1562 = vadd.f32 %v1561, %v1050
          %v1563 = vadd.f32 %v1562, %v1051
          %v1564 = vadd.f32 %v1563, %v1052
          %v1565 = vadd.f32 %v1564, %v1053
          %v1566 = vadd.f32 %v1565, %v1054
          %v1567 = vadd.f32 %v1566, %v1055
          %v1568 = vadd.f32 %v1567, %v1056
          %v1569 = vadd.f32 %v1568, %v1057
          %v1570 = vadd.f32 %v1569, %v1058
          %v1571 = vadd.f32 %v1570, %v1059
          %v1572 = vadd.f32 %v1571, %v1060
          %v1573 = vadd.f32 %v1572, %v1061
          %v1574 = vadd.f32 %v1573, %v1062
          %v1575 = vadd.f32 %v1574, %v1063
          %v1576 = vadd.f32 %v1575, %v1064
          %v1577 = vadd.f32 %v1576, %v1065
          %v1578 = vadd.f32 %v1577, %v1066
          %v1579 = vadd.f32 %v1578, %v1067
          %v1580 = vadd.f32 %v1579, %v1068
          %v1581 = vadd.f32 %v1580, %v1069
          %v1582 = vadd.f32 %v1581, %v1070
          %v1583 = vadd.f32 %v1582, %v1071
          %v1584 = vadd.f32 %v1583, %v1072
          %v1585 = vadd.f32 %v1584, %v1073
          %v1586 = vadd.f32 %v1585, %v1074
          %v1587 = vadd.f32 %v1586, %v1075
          %v1588 = vadd.f32 %v1587, %v1076
          %v1589 = vadd.f32 %v1588, %v1077
          %v1590 = vadd.f32 %v1589, %v1078
          %v1591 = vadd.f32 %v1590, %v1079
          %v1592 = vadd.f32 %v1591, %v1080
          %v1593 = vadd.f32 %v1592, %v1081
          %v1594 = vadd.f32 %v1593, %v1082
          %v1595 = vadd.f32 %v1594, %v1083
          %v1596 = vadd.f32 %v1595, %v1084
          %v1597 = vadd.f32 %v1596, %v1085
          %v1598 = vadd.f32 %v1597, %v1086
          %v1599 = vadd.f32 %v1598, %v1087
          %v1600 = vadd.f32 %v1599, %v1088
          %v1601 = vadd.f32 %v1600, %v1089
          %v1602 = vadd.f32 %v1601, %v1090
          %v1603 = vadd.f32 %v1602, %v1091
          %v1604 = vadd.f32 %v1603, %v1092
          %v1605 = vadd.f32 %v1604, %v1093
          %v1606 = vadd.f32 %v1605, %v1094
          %v1607 = vadd.f32 %v1606, %v1095
          %v1608 = vadd.f32 %v1607, %v1096
          %v1609 = vadd.f32 %v1608, %v1097
          %v1610 = vadd.f32 %v1609, %v1098
          %v1611 = vadd.f32 %v1610, %v1099
          %v1612 = vadd.f32 %v1611, %v1100
          %v1613 = vadd.f32 %v1612, %v1101
          %v1614 = vadd.f32 %v1613, %v1102
          %v1615 = vadd.f32 %v1614, %v1103
          %v1616 = vadd.f32 %v1615, %v1104
          %v1617 = vadd.f32 %v1616, %v1105
          %v1618 = vadd.f32 %v1617, %v1106
          %v1619 = vadd.f32 %v1618, %v1107
          %v1620 = vadd.f32 %v1619, %v1108
          %v1621 = vadd.f32 %v1620, %v1109
          %v1622 = vadd.f32 %v1621, %v1110
          %v1623 = vadd.f32 %v1622, %v1111
          %v1624 = vadd.f32 %v1623, %v1112
          %v1625 = vadd.f32 %v1624, %v1113
          %v1626 = vadd.f32 %v1625, %v1114
          %v1627 = vadd.f32 %v1626, %v1115
          %v1628 = vadd.f32 %v1627, %v1116
          %v1629 = vadd.f32 %v1628, %v1117
          %v1630 = vadd.f32 %v1629, %v1118
          %v1631 = vadd.f32 %v1630, %v1119
          %v1632 = vadd.f32 %v1631, %v1120
          %v1633 = vadd.f32 %v1632, %v1121
          %v1634 = vadd.f32 %v1633, %v1122
          %v1635 = vadd.f32 %v1634, %v1123
          %v1636 = vadd.f32 %v1635, %v1124
          %v1637 = vadd.f32 %v1636, %v1125
          %v1638 = vadd.f32 %v1637, %v1126
          %v1639 = vadd.f32 %v1638, %v1127
          %v1640 = vadd.f32 %v1639, %v1128
          %v1641 = vadd.f32 %v1640, %v1129
          %v1642 = vadd.f32 %v1641, %v1130
          %v1643 = vadd.f32 %v1642, %v1131
          %v1644 = vadd.f32 %v1643, %v1132
          %v1645 = vadd.f32 %v1644, %v1133
          %v1646 = vadd.f32 %v1645, %v1134
          %v1647 = vadd.f32 %v1646, %v1135
          %v1648 = vadd.f32 %v1647, %v1136
          %v1649 = vadd.f32 %v1648, %v1137
          %v1650 = vadd.f32 %v1649, %v1138
          %v1651 = vadd.f32 %v1650, %v1139
          %v1652 = vadd.f32 %v1651, %v1140
          %v1653 = vadd.f32 %v1652, %v1141
          %v1654 = vadd.f32 %v1653, %v1142
          %v1655 = vadd.f32 %v1654, %v1143
          %v1656 = vadd.f32 %v1655, %v1144
          %v1657 = vadd.f32 %v1656, %v1145
          %v1658 = vadd.f32 %v1657, %v1146
          %v1659 = vadd.f32 %v1658, %v1147
          %v1660 = vadd.f32 %v1659, %v1148
          %v1661 = vadd.f32 %v1660, %v1149
          %v1662 = vadd.f32 %v1661, %v1150
          %v1663 = vadd.f32 %v1662, %v1151
          %v1664 = vadd.f32 %v1663, %v1152
          %v1665 = vadd.f32 %v1664, %v1153
          %v1666 = vadd.f32 %v1665, %v1154
          %v1667 = vadd.f32 %v1666, %v1155
          %v1668 = vadd.f32 %v1667, %v1156
          %v1669 = vadd.f32 %v1668, %v1157
          %v1670 = vadd.f32 %v1669, %v1158
          %v1671 = vadd.f32 %v1670, %v1159
          %v1672 = vadd.f32 %v1671, %v1160
          %v1673 = vadd.f32 %v1672, %v1161
          %v1674 = vadd.f32 %v1673, %v1162
          %v1675 = vadd.f32 %v1674, %v1163
          %v1676 = vadd.f32 %v1675, %v1164
          %v1677 = vadd.f32 %v1676, %v1165
          %v1678 = vadd.f32 %v1677, %v1166
          %v1679 = vadd.f32 %v1678, %v1167
          %v1680 = vadd.f32 %v1679, %v1168
          %v1681 = vadd.f32 %v1680, %v1169
          %v1682 = vadd.f32 %v1681, %v1170
          %v1683 = vadd.f32 %v1682, %v1171
          %v1684 = vadd.f32 %v1683, %v1172
          %v1685 = vadd.f32 %v1684, %v1173
          %v1686 = vadd.f32 %v1685, %v1174
          %v1687 = vadd.f32 %v1686, %v1175
          %v1688 = vadd.f32 %v1687, %v1176
          %v1689 = vadd.f32 %v1688, %v1177
          %v1690 = vadd.f32 %v1689, %v1178
          %v1691 = vadd.f32 %v1690, %v1179
          %v1692 = vadd.f32 %v1691, %v1180
          %v1693 = vadd.f32 %v1692, %v1181
          %v1694 = vadd.f32 %v1693, %v1182
          %v1695 = vadd.f32 %v1694, %v1183
          %v1696 = vadd.f32 %v1695, %v1184
          %v1697 = vadd.f32 %v1696, %v1185
          %v1698 = vadd.f32 %v1697, %v1186
          %v1699 = vadd.f32 %v1698, %v1187
          %v1700 = vadd.f32 %v1699, %v1188
          %v1701 = vadd.f32 %v1700, %v1189
          %v1702 = vadd.f32 %v1701, %v1190
          %v1703 = vadd.f32 %v1702, %v1191
          %v1704 = vadd.f32 %v1703, %v1192
          %v1705 = vadd.f32 %v1704, %v1193
          %v1706 = vadd.f32 %v1705, %v1194
          %v1707 = vadd.f32 %v1706, %v1195
          %v1708 = vadd.f32 %v1707, %v1196
          %v1709 = vadd.f32 %v1708, %v1197
          %v1710 = vadd.f32 %v1709, %v1198
          %v1711 = vadd.f32 %v1710, %v1199
          %v1712 = vadd.f32 %v1711, %v1200
          %v1713 = vadd.f32 %v1712, %v1201
          %v1714 = vadd.f32 %v1713, %v1202
          %v1715 = vadd.f32 %v1714, %v1203
          %v1716 = vadd.f32 %v1715, %v1204
          %v1717 = vadd.f32 %v1716, %v1205
          %v1718 = vadd.f32 %v1717, %v1206
          %v1719 = vadd.f32 %v1718, %v1207
          %v1720 = vadd.f32 %v1719, %v1208
          %v1721 = vadd.f32 %v1720, %v1209
          %v1722 = vadd.f32 %v1721, %v1210
          %v1723 = vadd.f32 %v1722, %v1211
          %v1724 = vadd.f32 %v1723, %v1212
          %v1725 = vadd.f32 %v1724, %v1213
          %v1726 = vadd.f32 %v1725, %v1214
          %v1727 = vadd.f32 %v1726, %v1215
          %v1728 = vadd.f32 %v1727, %v1216
          %v1729 = vadd.f32 %v1728, %v1217
          %v1730 = vadd.f32 %v1729, %v1218
          %v1731 = vadd.f32 %v1730, %v1219
          %v1732 = vadd.f32 %v1731, %v1220
          %v1733 = vadd.f32 %v1732, %v1221
          %v1734 = vadd.f32 %v1733, %v1222
          %v1735 = vadd.f32 %v1734, %v1223
          %v1736 = vadd.f32 %v1735, %v1224
          %v1737 = vadd.f32 %v1736, %v1225
          %v1738 = vadd.f32 %v1737, %v1226
          %v1739 = vadd.f32 %v1738, %v1227
          %v1740 = vadd.f32 %v1739, %v1228
          %v1741 = vadd.f32 %v1740, %v1229
          %v1742 = vadd.f32 %v1741, %v1230
          %v1743 = vadd.f32 %v1742, %v1231
          %v1744 = vadd.f32 %v1743, %v1232
          %v1745 = vadd.f32 %v1744, %v1233
          %v1746 = vadd.f32 %v1745, %v1234
          %v1747 = vadd.f32 %v1746, %v1235
          %v1748 = vadd.f32 %v1747, %v1236
          %v1749 = vadd.f32 %v1748, %v1237
          %v1750 = vadd.f32 %v1749, %v1238
          %v1751 = vadd.f32 %v1750, %v1239
          %v1752 = vadd.f32 %v1751, %v1240
          %v1753 = vadd.f32 %v1752, %v1241
          %v1754 = vadd.f32 %v1753, %v1242
          %v1755 = vadd.f32 %v1754, %v1243
          %v1756 = vadd.f32 %v1755, %v1244
          %v1757 = vadd.f32 %v1756, %v1245
          %v1758 = vadd.f32 %v1757, %v1246
          %v1759 = vadd.f32 %v1758, %v1247
          %v1760 = vadd.f32 %v1759, %v1248
          %v1761 = vadd.f32 %v1760, %v1249
          %v1762 = vadd.f32 %v1761, %v1250
          %v1763 = vadd.f32 %v1762, %v1251
          %v1764 = vadd.f32 %v1763, %v1252
          %v1765 = vadd.f32 %v1764, %v1253
          %v1766 = vadd.f32 %v1765, %v1254
          %v1767 = vadd.f32 %v1766, %v1255
          %v1768 = vadd.f32 %v1767, %v1256
          %v1769 = vadd.f32 %v1768, %v1257
          %v1770 = vadd.f32 %v1769, %v1258
          %v1771 = vadd.f32 %v1770, %v1259
          %v1772 = vadd.f32 %v1771, %v1260
          %v1773 = vadd.f32 %v1772, %v1261
          %v1774 = vadd.f32 %v1773, %v1262
          %v1775 = vadd.f32 %v1774, %v1263
          %v1776 = vadd.f32 %v1775, %v1264
          %v1777 = vadd.f32 %v1776, %v1265
          %v1778 = vadd.f32 %v1777, %v1266
          %v1779 = vadd.f32 %v1778, %v1267
          %v1780 = vadd.f32 %v1779, %v1268
          %v1781 = vadd.f32 %v1780, %v1269
          %v1782 = vadd.f32 %v1781, %v1270
          %v1783 = vadd.f32 %v1782, %v1271
          %v1784 = vadd.f32 %v1783, %v1272
          %v1785 = vadd.f32 %v1784, %v1273
          %v1786 = vadd.f32 %v1785, %v1274
          %v1787 = vadd.f32 %v1786, %v1275
          %v1788 = vadd.f32 %v1787, %v1276
          %v1789 = vadd.f32 %v1788, %v1277
          %v1790 = vadd.f32 %v1789, %v1278
          %v1791 = vadd.f32 %v1790, %v1279
          %v1792 = vadd.f32 %v1791, %v1280
          %v1793 = vadd.f32 %v1792, %v1281
          %v1794 = vadd.f32 %v1793, %v1282
          %v1795 = vadd.f32 %v1794, %v1283
          %v1796 = vadd.f32 %v1795, %v1284
          %v1797 = vadd.f32 %v1796, %v1285
          %v1798 = vadd.f32 %v1797, %v1286
          %v1799 = vadd.f32 %v1798, %v1287
          %v1800 = vadd.f32 %v1799, %v1288
          %v1801 = vadd.f32 %v1800, %v1289
          %v1802 = vadd.f32 %v1801, %v1290
          %v1803 = vadd.f32 %v1802, %v1291
          %v1804 = vadd.f32 %v1803, %v1292
          %v1805 = vadd.f32 %v1804, %v1293
          %v1806 = vadd.f32 %v1805, %v1294
          %v1807 = vadd.f32 %v1806, %v1295
          %v1808 = vadd.f32 %v1807, %v1296
          %v1809 = vadd.f32 %v1808, %v1297
          %v1810 = vadd.f32 %v1809, %v1298
          %v1811 = vadd.f32 %v1810, %v1299
          %v1812 = vadd.f32 %v1811, %v1300
          %v1813 = vadd.f32 %v1812, %v1301
          %v1814 = vadd.f32 %v1813, %v1302
          %v1815 = vadd.f32 %v1814, %v1303
          %v1816 = vadd.f32 %v1815, %v1304
          %v1817 = vadd.f32 %v1816, %v1305
          %v1818 = vadd.f32 %v1817, %v1306
          %v1819 = vadd.f32 %v1818, %v1307
          %v1820 = vadd.f32 %v1819, %v1308
          %v1821 = vadd.f32 %v1820, %v1309
          %v1822 = vadd.f32 %v1821, %v1310
          %v1823 = vadd.f32 %v1822, %v1311
          %v1824 = vadd.f32 %v1823, %v1312
          %v1825 = vadd.f32 %v1824, %v1313
          %v1826 = vadd.f32 %v1825, %v1314
          %v1827 = vadd.f32 %v1826, %v1315
          %v1828 = vadd.f32 %v1827, %v1316
          %v1829 = vadd.f32 %v1828, %v1317
          %v1830 = vadd.f32 %v1829, %v1318
          %v1831 = vadd.f32 %v1830, %v1319
          %v1832 = vadd.f32 %v1831, %v1320
          %v1833 = vadd.f32 %v1832, %v1321
          %v1834 = vadd.f32 %v1833, %v1322
          %v1835 = vadd.f32 %v1834, %v1323
          %v1836 = vadd.f32 %v1835, %v1324
          %v1837 = vadd.f32 %v1836, %v1325
          %v1838 = vadd.f32 %v1837, %v1326
          %v1839 = vadd.f32 %v1838, %v1327
          %v1840 = vadd.f32 %v1839, %v1328
          %v1841 = vadd.f32 %v1840, %v1329
          %v1842 = vadd.f32 %v1841, %v1330
          %v1843 = vadd.f32 %v1842, %v1331
          %v1844 = vadd.f32 %v1843, %v1332
          %v1845 = vadd.f32 %v1844, %v1333
          %v1846 = vadd.f32 %v1845, %v1334
          %v1847 = vadd.f32 %v1846, %v1335
          %v1848 = vadd.f32 %v1847, %v1336
          %v1849 = vadd.f32 %v1848, %v1337
          %v1850 = vadd.f32 %v1849, %v1338
          %v1851 = vadd.f32 %v1850, %v1339
          %v1852 = vadd.f32 %v1851, %v1340
          %v1853 = vadd.f32 %v1852, %v1341
          %v1854 = vadd.f32 %v1853, %v1342
          %v1855 = vadd.f32 %v1854, %v1343
          %v1856 = vadd.f32 %v1855, %v1344
          %v1857 = vadd.f32 %v1856, %v1345
          %v1858 = vadd.f32 %v1857, %v1346
          %v1859 = vadd.f32 %v1858, %v1347
          %v1860 = vadd.f32 %v1859, %v1348
          %v1861 = vadd.f32 %v1860, %v1349
          %v1862 = vadd.f32 %v1861, %v1350
          %v1863 = vadd.f32 %v1862, %v1351
          %v1864 = vadd.f32 %v1863, %v1352
          %v1865 = vadd.f32 %v1864, %v1353
          %v1866 = vadd.f32 %v1865, %v1354
          %v1867 = vadd.f32 %v1866, %v1355
          %v1868 = vadd.f32 %v1867, %v1356
          %v1869 = vadd.f32 %v1868, %v1357
          %v1870 = vadd.f32 %v1869, %v1358
          %v1871 = vadd.f32 %v1870, %v1359
          %v1872 = vadd.f32 %v1871, %v1360
          %v1873 = vadd.f32 %v1872, %v1361
          %v1874 = vadd.f32 %v1873, %v1362
          %v1875 = vadd.f32 %v1874, %v1363
          %v1876 = vadd.f32 %v1875, %v1364
          %v1877 = vadd.f32 %v1876, %v1365
          %v1878 = vadd.f32 %v1877, %v1366
          %v1879 = vadd.f32 %v1878, %v1367
          %v1880 = vadd.f32 %v1879, %v1368
          %v1881 = vadd.f32 %v1880, %v1369
          %v1882 = vadd.f32 %v1881, %v1370
          %v1883 = vadd.f32 %v1882, %v1371
          %v1884 = vadd.f32 %v1883, %v1372
          %v1885 = vadd.f32 %v1884, %v1373
          %v1886 = vadd.f32 %v1885, %v1374
          %v1887 = vadd.f32 %v1886, %v1375
          %v1888 = vadd.f32 %v1887, %v1376
          %v1889 = vadd.f32 %v1888, %v1377
          %v1890 = vadd.f32 %v1889, %v1378
          %v1891 = vadd.f32 %v1890, %v1379
          %v1892 = vadd.f32 %v1891, %v1380
          %v1893 = vadd.f32 %v1892, %v1381
          %v1894 = vadd.f32 %v1893, %v1382
          %v1895 = vadd.f32 %v1894, %v1383
          %v1896 = vadd.f32 %v1895, %v1384
          %v1897 = vadd.f32 %v1896, %v1385
          %v1898 = vadd.f32 %v1897, %v1386
          %v1899 = vadd.f32 %v1898, %v1387
          %v1900 = vadd.f32 %v1899, %v1388
          %v1901 = vadd.f32 %v1900, %v1389
          %v1902 = vadd.f32 %v1901, %v1390
          %v1903 = vadd.f32 %v1902, %v1391
          %v1904 = vadd.f32 %v1903, %v1392
          %v1905 = vadd.f32 %v1904, %v1393
          %v1906 = vadd.f32 %v1905, %v1394
          %v1907 = vadd.f32 %v1906, %v1395
          %v1908 = vadd.f32 %v1907, %v1396
          %v1909 = vadd.f32 %v1908, %v1397
          %v1910 = vadd.f32 %v1909, %v1398
          %v1911 = vadd.f32 %v1910, %v1399
          %v1912 = vadd.f32 %v1911, %v1400
          %v1913 = vadd.f32 %v1912, %v1401
          %v1914 = vadd.f32 %v1913, %v1402
          %v1915 = vadd.f32 %v1914, %v1403
          %v1916 = vadd.f32 %v1915, %v1404
          %v1917 = vadd.f32 %v1916, %v1405
          %v1918 = vadd.f32 %v1917, %v1406
          %v1919 = vadd.f32 %v1918, %v1407
          %v1920 = vadd.f32 %v1919, %v1408
          %v1921 = vadd.f32 %v1920, %v1409
          %v1922 = vadd.f32 %v1921, %v1410
          %v1923 = vadd.f32 %v1922, %v1411
          %v1924 = vadd.f32 %v1923, %v1412
          %v1925 = vadd.f32 %v1924, %v1413
          %v1926 = vadd.f32 %v1925, %v1414
          %v1927 = vadd.f32 %v1926, %v1415
          %v1928 = vadd.f32 %v1927, %v1416
          %v1929 = vadd.f32 %v1928, %v1417
          %v1930 = vadd.f32 %v1929, %v1418
          %v1931 = vadd.f32 %v1930, %v1419
          %v1932 = vadd.f32 %v1931, %v1420
          %v1933 = vadd.f32 %v1932, %v1421
          %v1934 = vadd.f32 %v1933, %v1422
          %v1935 = vadd.f32 %v1934, %v1423
          %v1936 = vadd.f32 %v1935, %v1424
          %v1937 = vadd.f32 %v1936, %v1425
          %v1938 = vadd.f32 %v1937, %v1426
          %v1939 = vadd.f32 %v1938, %v1427
          %v1940 = vadd.f32 %v1939, %v1428
          %v1941 = vadd.f32 %v1940, %v1429
          %v1942 = vadd.f32 %v1941, %v1430
          %v1943 = vadd.f32 %v1942, %v1431
          %v1944 = vadd.f32 %v1943, %v1432
          %v1945 = vadd.f32 %v1944, %v1433
          %v1946 = vadd.f32 %v1945, %v1434
          %v1947 = vadd.f32 %v1946, %v1435
          %v1948 = vadd.f32 %v1947, %v1436
          %v1949 = vadd.f32 %v1948, %v1437
          %v1950 = vadd.f32 %v1949, %v1438
          %v1951 = vadd.f32 %v1950, %v1439
          %v1952 = vadd.f32 %v1951, %v1440
          %v1953 = vadd.f32 %v1952, %v1441
          %v1954 = vadd.f32 %v1953, %v1442
          %v1955 = vadd.f32 %v1954, %v1443
          %v1956 = vadd.f32 %v1955, %v1444
          %v1957 = vadd.f32 %v1956, %v1445
          %v1958 = vadd.f32 %v1957, %v1446
          %v1959 = vadd.f32 %v1958, %v1447
          %v1960 = vadd.f32 %v1959, %v1448
          %v1961 = vadd.f32 %v1960, %v1449
          %v1962 = vadd.f32 %v1961, %v1450
          %v1963 = vadd.f32 %v1962, %v1451
          %v1964 = vadd.f32 %v1963, %v1452
          %v1965 = vadd.f32 %v1964, %v1453
          %v1966 = vadd.f32 %v1965, %v1454
          %v1967 = vadd.f32 %v1966, %v1455
          %v1968 = vadd.f32 %v1967, %v1456
          %v1969 = vadd.f32 %v1968, %v1457
          %v1970 = vadd.f32 %v1969, %v1458
          %v1971 = vadd.f32 %v1970, %v1459
          %v1972 = vadd.f32 %v1971, %v1460
          %v1973 = vadd.f32 %v1972, %v1461
          %v1974 = vadd.f32 %v1973, %v1462
          %v1975 = vadd.f32 %v1974, %v1463
          %v1976 = vadd.f32 %v1975, %v1464
          %v1977 = vadd.f32 %v1976, %v1465
          %v1978 = vadd.f32 %v1977, %v1466
          %v1979 = vadd.f32 %v1978, %v1467
          %v1980 = vadd.f32 %v1979, %v1468
          %v1981 = vadd.f32 %v1980, %v1469
          %v1982 = vadd.f32 %v1981, %v1470
          %v1983 = vadd.f32 %v1982, %v1471
          %v1984 = vadd.f32 %v1983, %v1472
          %v1985 = vadd.f32 %v1984, %v1473
          %v1986 = vadd.f32 %v1985, %v1474
          %v1987 = vadd.f32 %v1986, %v1475
          %v1988 = vadd.f32 %v1987, %v1476
          %v1989 = vadd.f32 %v1988, %v1477
          %v1990 = vadd.f32 %v1989, %v1478
          %v1991 = vadd.f32 %v1990, %v1479
          %v1992 = vadd.f32 %v1991, %v1480
          %v1993 = vadd.f32 %v1481, %v1992
          %1994 = vst [vmem:[#allocation2] sm:$0xff] %v1993
        $region84: #{tpu_custom_call.1} parent=47 // pred_fallthru
          _
        %p1995 = scmp.ge.s32.totalorder %s25, 2
        %p1996 = scmp.lt.s32.totalorder %s25, 3
        %p1997 = pnand %p1995, %p1996
        %p1998 = pneg %p1997
        // Predicated region
        $region85: #{tpu_custom_call.1} parent=47 // pred_check
          _
        $region86: #{tpu_custom_call.1} parent=47 // pred_check_branch
          %2000 = sbr.rel (%p1997) target = $region88
        $region87: #{tpu_custom_call.1} parent=47 // pred_region
          %v2001 = vld [vmem:[%s390] sm:$0xf]
          %v2002 = vld [vmem:[%s390 + $0x4] sm:$0xf]
          %v2003 = vld [vmem:[%s390 + $0x8] sm:$0xf]
          %v2004 = vld [vmem:[%s390 + $0xc] sm:$0xf]
          %v2005 = vld [vmem:[%s390 + $0x10] sm:$0xf]
          %v2006 = vld [vmem:[%s390 + $0x14] sm:$0xf]
          %v2007 = vld [vmem:[%s390 + $0x18] sm:$0xf]
          %v2008 = vld [vmem:[%s390 + $0x1c] sm:$0xf]
          %v2009 = vld [vmem:[%s390 + $0x20] sm:$0xf]
          %v2010 = vld [vmem:[%s390 + $0x24] sm:$0xf]
          %v2011 = vld [vmem:[%s390 + $0x28] sm:$0xf]
          %v2012 = vld [vmem:[%s390 + $0x2c] sm:$0xf]
          %v2013 = vld [vmem:[%s390 + $0x30] sm:$0xf]
          %v2014 = vld [vmem:[%s390 + $0x34] sm:$0xf]
          %v2015 = vld [vmem:[%s390 + $0x38] sm:$0xf]
          %v2016 = vld [vmem:[%s390 + $0x3c] sm:$0xf]
          %v2017 = vld [vmem:[%s390 + $0x40] sm:$0xf]
          %v2018 = vld [vmem:[%s390 + $0x44] sm:$0xf]
          %v2019 = vld [vmem:[%s390 + $0x48] sm:$0xf]
          %v2020 = vld [vmem:[%s390 + $0x4c] sm:$0xf]
          %v2021 = vld [vmem:[%s390 + $0x50] sm:$0xf]
          %v2022 = vld [vmem:[%s390 + $0x54] sm:$0xf]
          %v2023 = vld [vmem:[%s390 + $0x58] sm:$0xf]
          %v2024 = vld [vmem:[%s390 + $0x5c] sm:$0xf]
          %v2025 = vld [vmem:[%s390 + $0x60] sm:$0xf]
          %v2026 = vld [vmem:[%s390 + $0x64] sm:$0xf]
          %v2027 = vld [vmem:[%s390 + $0x68] sm:$0xf]
          %v2028 = vld [vmem:[%s390 + $0x6c] sm:$0xf]
          %v2029 = vld [vmem:[%s390 + $0x70] sm:$0xf]
          %v2030 = vld [vmem:[%s390 + $0x74] sm:$0xf]
          %v2031 = vld [vmem:[%s390 + $0x78] sm:$0xf]
          %v2032 = vld [vmem:[%s390 + $0x7c] sm:$0xf]
          %v2033 = vld [vmem:[%s390 + $0x80] sm:$0xf]
          %v2034 = vld [vmem:[%s390 + $0x84] sm:$0xf]
          %v2035 = vld [vmem:[%s390 + $0x88] sm:$0xf]
          %v2036 = vld [vmem:[%s390 + $0x8c] sm:$0xf]
          %v2037 = vld [vmem:[%s390 + $0x90] sm:$0xf]
          %v2038 = vld [vmem:[%s390 + $0x94] sm:$0xf]
          %v2039 = vld [vmem:[%s390 + $0x98] sm:$0xf]
          %v2040 = vld [vmem:[%s390 + $0x9c] sm:$0xf]
          %v2041 = vld [vmem:[%s390 + $0xa0] sm:$0xf]
          %v2042 = vld [vmem:[%s390 + $0xa4] sm:$0xf]
          %v2043 = vld [vmem:[%s390 + $0xa8] sm:$0xf]
          %v2044 = vld [vmem:[%s390 + $0xac] sm:$0xf]
          %v2045 = vld [vmem:[%s390 + $0xb0] sm:$0xf]
          %v2046 = vld [vmem:[%s390 + $0xb4] sm:$0xf]
          %v2047 = vld [vmem:[%s390 + $0xb8] sm:$0xf]
          %v2048 = vld [vmem:[%s390 + $0xbc] sm:$0xf]
          %v2049 = vld [vmem:[%s390 + $0xc0] sm:$0xf]
          %v2050 = vld [vmem:[%s390 + $0xc4] sm:$0xf]
          %v2051 = vld [vmem:[%s390 + $0xc8] sm:$0xf]
          %v2052 = vld [vmem:[%s390 + $0xcc] sm:$0xf]
          %v2053 = vld [vmem:[%s390 + $0xd0] sm:$0xf]
          %v2054 = vld [vmem:[%s390 + $0xd4] sm:$0xf]
          %v2055 = vld [vmem:[%s390 + $0xd8] sm:$0xf]
          %v2056 = vld [vmem:[%s390 + $0xdc] sm:$0xf]
          %v2057 = vld [vmem:[%s390 + $0xe0] sm:$0xf]
          %v2058 = vld [vmem:[%s390 + $0xe4] sm:$0xf]
          %v2059 = vld [vmem:[%s390 + $0xe8] sm:$0xf]
          %v2060 = vld [vmem:[%s390 + $0xec] sm:$0xf]
          %v2061 = vld [vmem:[%s390 + $0xf0] sm:$0xf]
          %v2062 = vld [vmem:[%s390 + $0xf4] sm:$0xf]
          %v2063 = vld [vmem:[%s390 + $0xf8] sm:$0xf]
          %v2064 = vld [vmem:[%s390 + $0xfc] sm:$0xf]
          %v2065 = vld [vmem:[%s390 + $0x100] sm:$0xf]
          %v2066 = vld [vmem:[%s390 + $0x104] sm:$0xf]
          %v2067 = vld [vmem:[%s390 + $0x108] sm:$0xf]
          %v2068 = vld [vmem:[%s390 + $0x10c] sm:$0xf]
          %v2069 = vld [vmem:[%s390 + $0x110] sm:$0xf]
          %v2070 = vld [vmem:[%s390 + $0x114] sm:$0xf]
          %v2071 = vld [vmem:[%s390 + $0x118] sm:$0xf]
          %v2072 = vld [vmem:[%s390 + $0x11c] sm:$0xf]
          %v2073 = vld [vmem:[%s390 + $0x120] sm:$0xf]
          %v2074 = vld [vmem:[%s390 + $0x124] sm:$0xf]
          %v2075 = vld [vmem:[%s390 + $0x128] sm:$0xf]
          %v2076 = vld [vmem:[%s390 + $0x12c] sm:$0xf]
          %v2077 = vld [vmem:[%s390 + $0x130] sm:$0xf]
          %v2078 = vld [vmem:[%s390 + $0x134] sm:$0xf]
          %v2079 = vld [vmem:[%s390 + $0x138] sm:$0xf]
          %v2080 = vld [vmem:[%s390 + $0x13c] sm:$0xf]
          %v2081 = vld [vmem:[%s390 + $0x140] sm:$0xf]
          %v2082 = vld [vmem:[%s390 + $0x144] sm:$0xf]
          %v2083 = vld [vmem:[%s390 + $0x148] sm:$0xf]
          %v2084 = vld [vmem:[%s390 + $0x14c] sm:$0xf]
          %v2085 = vld [vmem:[%s390 + $0x150] sm:$0xf]
          %v2086 = vld [vmem:[%s390 + $0x154] sm:$0xf]
          %v2087 = vld [vmem:[%s390 + $0x158] sm:$0xf]
          %v2088 = vld [vmem:[%s390 + $0x15c] sm:$0xf]
          %v2089 = vld [vmem:[%s390 + $0x160] sm:$0xf]
          %v2090 = vld [vmem:[%s390 + $0x164] sm:$0xf]
          %v2091 = vld [vmem:[%s390 + $0x168] sm:$0xf]
          %v2092 = vld [vmem:[%s390 + $0x16c] sm:$0xf]
          %v2093 = vld [vmem:[%s390 + $0x170] sm:$0xf]
          %v2094 = vld [vmem:[%s390 + $0x174] sm:$0xf]
          %v2095 = vld [vmem:[%s390 + $0x178] sm:$0xf]
          %v2096 = vld [vmem:[%s390 + $0x17c] sm:$0xf]
          %v2097 = vld [vmem:[%s390 + $0x180] sm:$0xf]
          %v2098 = vld [vmem:[%s390 + $0x184] sm:$0xf]
          %v2099 = vld [vmem:[%s390 + $0x188] sm:$0xf]
          %v2100 = vld [vmem:[%s390 + $0x18c] sm:$0xf]
          %v2101 = vld [vmem:[%s390 + $0x190] sm:$0xf]
          %v2102 = vld [vmem:[%s390 + $0x194] sm:$0xf]
          %v2103 = vld [vmem:[%s390 + $0x198] sm:$0xf]
          %v2104 = vld [vmem:[%s390 + $0x19c] sm:$0xf]
          %v2105 = vld [vmem:[%s390 + $0x1a0] sm:$0xf]
          %v2106 = vld [vmem:[%s390 + $0x1a4] sm:$0xf]
          %v2107 = vld [vmem:[%s390 + $0x1a8] sm:$0xf]
          %v2108 = vld [vmem:[%s390 + $0x1ac] sm:$0xf]
          %v2109 = vld [vmem:[%s390 + $0x1b0] sm:$0xf]
          %v2110 = vld [vmem:[%s390 + $0x1b4] sm:$0xf]
          %v2111 = vld [vmem:[%s390 + $0x1b8] sm:$0xf]
          %v2112 = vld [vmem:[%s390 + $0x1bc] sm:$0xf]
          %v2113 = vld [vmem:[%s390 + $0x1c0] sm:$0xf]
          %v2114 = vld [vmem:[%s390 + $0x1c4] sm:$0xf]
          %v2115 = vld [vmem:[%s390 + $0x1c8] sm:$0xf]
          %v2116 = vld [vmem:[%s390 + $0x1cc] sm:$0xf]
          %v2117 = vld [vmem:[%s390 + $0x1d0] sm:$0xf]
          %v2118 = vld [vmem:[%s390 + $0x1d4] sm:$0xf]
          %v2119 = vld [vmem:[%s390 + $0x1d8] sm:$0xf]
          %v2120 = vld [vmem:[%s390 + $0x1dc] sm:$0xf]
          %v2121 = vld [vmem:[%s390 + $0x1e0] sm:$0xf]
          %v2122 = vld [vmem:[%s390 + $0x1e4] sm:$0xf]
          %v2123 = vld [vmem:[%s390 + $0x1e8] sm:$0xf]
          %v2124 = vld [vmem:[%s390 + $0x1ec] sm:$0xf]
          %v2125 = vld [vmem:[%s390 + $0x1f0] sm:$0xf]
          %v2126 = vld [vmem:[%s390 + $0x1f4] sm:$0xf]
          %v2127 = vld [vmem:[%s390 + $0x1f8] sm:$0xf]
          %v2128 = vld [vmem:[%s390 + $0x1fc] sm:$0xf]
          %v2129 = vunpack.c.l.bf16 %v2001
          %v2130 = vunpack.c.l.bf16 %v2002
          %v2131 = vunpack.c.l.bf16 %v2003
          %v2132 = vunpack.c.l.bf16 %v2004
          %v2133 = vunpack.c.l.bf16 %v2005
          %v2134 = vunpack.c.l.bf16 %v2006
          %v2135 = vunpack.c.l.bf16 %v2007
          %v2136 = vunpack.c.l.bf16 %v2008
          %v2137 = vunpack.c.l.bf16 %v2009
          %v2138 = vunpack.c.l.bf16 %v2010
          %v2139 = vunpack.c.l.bf16 %v2011
          %v2140 = vunpack.c.l.bf16 %v2012
          %v2141 = vunpack.c.l.bf16 %v2013
          %v2142 = vunpack.c.l.bf16 %v2014
          %v2143 = vunpack.c.l.bf16 %v2015
          %v2144 = vunpack.c.l.bf16 %v2016
          %v2145 = vunpack.c.l.bf16 %v2017
          %v2146 = vunpack.c.l.bf16 %v2018
          %v2147 = vunpack.c.l.bf16 %v2019
          %v2148 = vunpack.c.l.bf16 %v2020
          %v2149 = vunpack.c.l.bf16 %v2021
          %v2150 = vunpack.c.l.bf16 %v2022
          %v2151 = vunpack.c.l.bf16 %v2023
          %v2152 = vunpack.c.l.bf16 %v2024
          %v2153 = vunpack.c.l.bf16 %v2025
          %v2154 = vunpack.c.l.bf16 %v2026
          %v2155 = vunpack.c.l.bf16 %v2027
          %v2156 = vunpack.c.l.bf16 %v2028
          %v2157 = vunpack.c.l.bf16 %v2029
          %v2158 = vunpack.c.l.bf16 %v2030
          %v2159 = vunpack.c.l.bf16 %v2031
          %v2160 = vunpack.c.l.bf16 %v2032
          %v2161 = vunpack.c.l.bf16 %v2033
          %v2162 = vunpack.c.l.bf16 %v2034
          %v2163 = vunpack.c.l.bf16 %v2035
          %v2164 = vunpack.c.l.bf16 %v2036
          %v2165 = vunpack.c.l.bf16 %v2037
          %v2166 = vunpack.c.l.bf16 %v2038
          %v2167 = vunpack.c.l.bf16 %v2039
          %v2168 = vunpack.c.l.bf16 %v2040
          %v2169 = vunpack.c.l.bf16 %v2041
          %v2170 = vunpack.c.l.bf16 %v2042
          %v2171 = vunpack.c.l.bf16 %v2043
          %v2172 = vunpack.c.l.bf16 %v2044
          %v2173 = vunpack.c.l.bf16 %v2045
          %v2174 = vunpack.c.l.bf16 %v2046
          %v2175 = vunpack.c.l.bf16 %v2047
          %v2176 = vunpack.c.l.bf16 %v2048
          %v2177 = vunpack.c.l.bf16 %v2049
          %v2178 = vunpack.c.l.bf16 %v2050
          %v2179 = vunpack.c.l.bf16 %v2051
          %v2180 = vunpack.c.l.bf16 %v2052
          %v2181 = vunpack.c.l.bf16 %v2053
          %v2182 = vunpack.c.l.bf16 %v2054
          %v2183 = vunpack.c.l.bf16 %v2055
          %v2184 = vunpack.c.l.bf16 %v2056
          %v2185 = vunpack.c.l.bf16 %v2057
          %v2186 = vunpack.c.l.bf16 %v2058
          %v2187 = vunpack.c.l.bf16 %v2059
          %v2188 = vunpack.c.l.bf16 %v2060
          %v2189 = vunpack.c.l.bf16 %v2061
          %v2190 = vunpack.c.l.bf16 %v2062
          %v2191 = vunpack.c.l.bf16 %v2063
          %v2192 = vunpack.c.l.bf16 %v2064
          %v2193 = vunpack.c.l.bf16 %v2065
          %v2194 = vunpack.c.l.bf16 %v2066
          %v2195 = vunpack.c.l.bf16 %v2067
          %v2196 = vunpack.c.l.bf16 %v2068
          %v2197 = vunpack.c.l.bf16 %v2069
          %v2198 = vunpack.c.l.bf16 %v2070
          %v2199 = vunpack.c.l.bf16 %v2071
          %v2200 = vunpack.c.l.bf16 %v2072
          %v2201 = vunpack.c.l.bf16 %v2073
          %v2202 = vunpack.c.l.bf16 %v2074
          %v2203 = vunpack.c.l.bf16 %v2075
          %v2204 = vunpack.c.l.bf16 %v2076
          %v2205 = vunpack.c.l.bf16 %v2077
          %v2206 = vunpack.c.l.bf16 %v2078
          %v2207 = vunpack.c.l.bf16 %v2079
          %v2208 = vunpack.c.l.bf16 %v2080
          %v2209 = vunpack.c.l.bf16 %v2081
          %v2210 = vunpack.c.l.bf16 %v2082
          %v2211 = vunpack.c.l.bf16 %v2083
          %v2212 = vunpack.c.l.bf16 %v2084
          %v2213 = vunpack.c.l.bf16 %v2085
          %v2214 = vunpack.c.l.bf16 %v2086
          %v2215 = vunpack.c.l.bf16 %v2087
          %v2216 = vunpack.c.l.bf16 %v2088
          %v2217 = vunpack.c.l.bf16 %v2089
          %v2218 = vunpack.c.l.bf16 %v2090
          %v2219 = vunpack.c.l.bf16 %v2091
          %v2220 = vunpack.c.l.bf16 %v2092
          %v2221 = vunpack.c.l.bf16 %v2093
          %v2222 = vunpack.c.l.bf16 %v2094
          %v2223 = vunpack.c.l.bf16 %v2095
          %v2224 = vunpack.c.l.bf16 %v2096
          %v2225 = vunpack.c.l.bf16 %v2097
          %v2226 = vunpack.c.l.bf16 %v2098
          %v2227 = vunpack.c.l.bf16 %v2099
          %v2228 = vunpack.c.l.bf16 %v2100
          %v2229 = vunpack.c.l.bf16 %v2101
          %v2230 = vunpack.c.l.bf16 %v2102
          %v2231 = vunpack.c.l.bf16 %v2103
          %v2232 = vunpack.c.l.bf16 %v2104
          %v2233 = vunpack.c.l.bf16 %v2105
          %v2234 = vunpack.c.l.bf16 %v2106
          %v2235 = vunpack.c.l.bf16 %v2107
          %v2236 = vunpack.c.l.bf16 %v2108
          %v2237 = vunpack.c.l.bf16 %v2109
          %v2238 = vunpack.c.l.bf16 %v2110
          %v2239 = vunpack.c.l.bf16 %v2111
          %v2240 = vunpack.c.l.bf16 %v2112
          %v2241 = vunpack.c.l.bf16 %v2113
          %v2242 = vunpack.c.l.bf16 %v2114
          %v2243 = vunpack.c.l.bf16 %v2115
          %v2244 = vunpack.c.l.bf16 %v2116
          %v2245 = vunpack.c.l.bf16 %v2117
          %v2246 = vunpack.c.l.bf16 %v2118
          %v2247 = vunpack.c.l.bf16 %v2119
          %v2248 = vunpack.c.l.bf16 %v2120
          %v2249 = vunpack.c.l.bf16 %v2121
          %v2250 = vunpack.c.l.bf16 %v2122
          %v2251 = vunpack.c.l.bf16 %v2123
          %v2252 = vunpack.c.l.bf16 %v2124
          %v2253 = vunpack.c.l.bf16 %v2125
          %v2254 = vunpack.c.l.bf16 %v2126
          %v2255 = vunpack.c.l.bf16 %v2127
          %v2256 = vunpack.c.l.bf16 %v2128
          %v2257 = vmul.f32 %v2129, %v2129
          %v2258 = vmul.f32 %v2130, %v2130
          %v2259 = vmul.f32 %v2131, %v2131
          %v2260 = vmul.f32 %v2132, %v2132
          %v2261 = vmul.f32 %v2133, %v2133
          %v2262 = vmul.f32 %v2134, %v2134
          %v2263 = vmul.f32 %v2135, %v2135
          %v2264 = vmul.f32 %v2136, %v2136
          %v2265 = vmul.f32 %v2137, %v2137
          %v2266 = vmul.f32 %v2138, %v2138
          %v2267 = vmul.f32 %v2139, %v2139
          %v2268 = vmul.f32 %v2140, %v2140
          %v2269 = vmul.f32 %v2141, %v2141
          %v2270 = vmul.f32 %v2142, %v2142
          %v2271 = vmul.f32 %v2143, %v2143
          %v2272 = vmul.f32 %v2144, %v2144
          %v2273 = vmul.f32 %v2145, %v2145
          %v2274 = vmul.f32 %v2146, %v2146
          %v2275 = vmul.f32 %v2147, %v2147
          %v2276 = vmul.f32 %v2148, %v2148
          %v2277 = vmul.f32 %v2149, %v2149
          %v2278 = vmul.f32 %v2150, %v2150
          %v2279 = vmul.f32 %v2151, %v2151
          %v2280 = vmul.f32 %v2152, %v2152
          %v2281 = vmul.f32 %v2153, %v2153
          %v2282 = vmul.f32 %v2154, %v2154
          %v2283 = vmul.f32 %v2155, %v2155
          %v2284 = vmul.f32 %v2156, %v2156
          %v2285 = vmul.f32 %v2157, %v2157
          %v2286 = vmul.f32 %v2158, %v2158
          %v2287 = vmul.f32 %v2159, %v2159
          %v2288 = vmul.f32 %v2160, %v2160
          %v2289 = vmul.f32 %v2161, %v2161
          %v2290 = vmul.f32 %v2162, %v2162
          %v2291 = vmul.f32 %v2163, %v2163
          %v2292 = vmul.f32 %v2164, %v2164
          %v2293 = vmul.f32 %v2165, %v2165
          %v2294 = vmul.f32 %v2166, %v2166
          %v2295 = vmul.f32 %v2167, %v2167
          %v2296 = vmul.f32 %v2168, %v2168
          %v2297 = vmul.f32 %v2169, %v2169
          %v2298 = vmul.f32 %v2170, %v2170
          %v2299 = vmul.f32 %v2171, %v2171
          %v2300 = vmul.f32 %v2172, %v2172
          %v2301 = vmul.f32 %v2173, %v2173
          %v2302 = vmul.f32 %v2174, %v2174
          %v2303 = vmul.f32 %v2175, %v2175
          %v2304 = vmul.f32 %v2176, %v2176
          %v2305 = vmul.f32 %v2177, %v2177
          %v2306 = vmul.f32 %v2178, %v2178
          %v2307 = vmul.f32 %v2179, %v2179
          %v2308 = vmul.f32 %v2180, %v2180
          %v2309 = vmul.f32 %v2181, %v2181
          %v2310 = vmul.f32 %v2182, %v2182
          %v2311 = vmul.f32 %v2183, %v2183
          %v2312 = vmul.f32 %v2184, %v2184
          %v2313 = vmul.f32 %v2185, %v2185
          %v2314 = vmul.f32 %v2186, %v2186
          %v2315 = vmul.f32 %v2187, %v2187
          %v2316 = vmul.f32 %v2188, %v2188
          %v2317 = vmul.f32 %v2189, %v2189
          %v2318 = vmul.f32 %v2190, %v2190
          %v2319 = vmul.f32 %v2191, %v2191
          %v2320 = vmul.f32 %v2192, %v2192
          %v2321 = vmul.f32 %v2193, %v2193
          %v2322 = vmul.f32 %v2194, %v2194
          %v2323 = vmul.f32 %v2195, %v2195
          %v2324 = vmul.f32 %v2196, %v2196
          %v2325 = vmul.f32 %v2197, %v2197
          %v2326 = vmul.f32 %v2198, %v2198
          %v2327 = vmul.f32 %v2199, %v2199
          %v2328 = vmul.f32 %v2200, %v2200
          %v2329 = vmul.f32 %v2201, %v2201
          %v2330 = vmul.f32 %v2202, %v2202
          %v2331 = vmul.f32 %v2203, %v2203
          %v2332 = vmul.f32 %v2204, %v2204
          %v2333 = vmul.f32 %v2205, %v2205
          %v2334 = vmul.f32 %v2206, %v2206
          %v2335 = vmul.f32 %v2207, %v2207
          %v2336 = vmul.f32 %v2208, %v2208
          %v2337 = vmul.f32 %v2209, %v2209
          %v2338 = vmul.f32 %v2210, %v2210
          %v2339 = vmul.f32 %v2211, %v2211
          %v2340 = vmul.f32 %v2212, %v2212
          %v2341 = vmul.f32 %v2213, %v2213
          %v2342 = vmul.f32 %v2214, %v2214
          %v2343 = vmul.f32 %v2215, %v2215
          %v2344 = vmul.f32 %v2216, %v2216
          %v2345 = vmul.f32 %v2217, %v2217
          %v2346 = vmul.f32 %v2218, %v2218
          %v2347 = vmul.f32 %v2219, %v2219
          %v2348 = vmul.f32 %v2220, %v2220
          %v2349 = vmul.f32 %v2221, %v2221
          %v2350 = vmul.f32 %v2222, %v2222
          %v2351 = vmul.f32 %v2223, %v2223
          %v2352 = vmul.f32 %v2224, %v2224
          %v2353 = vmul.f32 %v2225, %v2225
          %v2354 = vmul.f32 %v2226, %v2226
          %v2355 = vmul.f32 %v2227, %v2227
          %v2356 = vmul.f32 %v2228, %v2228
          %v2357 = vmul.f32 %v2229, %v2229
          %v2358 = vmul.f32 %v2230, %v2230
          %v2359 = vmul.f32 %v2231, %v2231
          %v2360 = vmul.f32 %v2232, %v2232
          %v2361 = vmul.f32 %v2233, %v2233
          %v2362 = vmul.f32 %v2234, %v2234
          %v2363 = vmul.f32 %v2235, %v2235
          %v2364 = vmul.f32 %v2236, %v2236
          %v2365 = vmul.f32 %v2237, %v2237
          %v2366 = vmul.f32 %v2238, %v2238
          %v2367 = vmul.f32 %v2239, %v2239
          %v2368 = vmul.f32 %v2240, %v2240
          %v2369 = vmul.f32 %v2241, %v2241
          %v2370 = vmul.f32 %v2242, %v2242
          %v2371 = vmul.f32 %v2243, %v2243
          %v2372 = vmul.f32 %v2244, %v2244
          %v2373 = vmul.f32 %v2245, %v2245
          %v2374 = vmul.f32 %v2246, %v2246
          %v2375 = vmul.f32 %v2247, %v2247
          %v2376 = vmul.f32 %v2248, %v2248
          %v2377 = vmul.f32 %v2249, %v2249
          %v2378 = vmul.f32 %v2250, %v2250
          %v2379 = vmul.f32 %v2251, %v2251
          %v2380 = vmul.f32 %v2252, %v2252
          %v2381 = vmul.f32 %v2253, %v2253
          %v2382 = vmul.f32 %v2254, %v2254
          %v2383 = vmul.f32 %v2255, %v2255
          %v2384 = vmul.f32 %v2256, %v2256
          %v2385 = vld [vmem:[#allocation2] sm:$0xff]
          %v2386 = vadd.f32 %v2257, %v2258
          %v2387 = vadd.f32 %v2386, %v2259
          %v2388 = vadd.f32 %v2387, %v2260
          %v2389 = vadd.f32 %v2388, %v2261
          %v2390 = vadd.f32 %v2389, %v2262
          %v2391 = vadd.f32 %v2390, %v2263
          %v2392 = vadd.f32 %v2391, %v2264
          %v2393 = vadd.f32 %v2392, %v2265
          %v2394 = vadd.f32 %v2393, %v2266
          %v2395 = vadd.f32 %v2394, %v2267
          %v2396 = vadd.f32 %v2395, %v2268
          %v2397 = vadd.f32 %v2396, %v2269
          %v2398 = vadd.f32 %v2397, %v2270
          %v2399 = vadd.f32 %v2398, %v2271
          %v2400 = vadd.f32 %v2399, %v2272
          %v2401 = vadd.f32 %v2400, %v2273
          %v2402 = vadd.f32 %v2401, %v2274
          %v2403 = vadd.f32 %v2402, %v2275
          %v2404 = vadd.f32 %v2403, %v2276
          %v2405 = vadd.f32 %v2404, %v2277
          %v2406 = vadd.f32 %v2405, %v2278
          %v2407 = vadd.f32 %v2406, %v2279
          %v2408 = vadd.f32 %v2407, %v2280
          %v2409 = vadd.f32 %v2408, %v2281
          %v2410 = vadd.f32 %v2409, %v2282
          %v2411 = vadd.f32 %v2410, %v2283
          %v2412 = vadd.f32 %v2411, %v2284
          %v2413 = vadd.f32 %v2412, %v2285
          %v2414 = vadd.f32 %v2413, %v2286
          %v2415 = vadd.f32 %v2414, %v2287
          %v2416 = vadd.f32 %v2415, %v2288
          %v2417 = vadd.f32 %v2416, %v2289
          %v2418 = vadd.f32 %v2417, %v2290
          %v2419 = vadd.f32 %v2418, %v2291
          %v2420 = vadd.f32 %v2419, %v2292
          %v2421 = vadd.f32 %v2420, %v2293
          %v2422 = vadd.f32 %v2421, %v2294
          %v2423 = vadd.f32 %v2422, %v2295
          %v2424 = vadd.f32 %v2423, %v2296
          %v2425 = vadd.f32 %v2424, %v2297
          %v2426 = vadd.f32 %v2425, %v2298
          %v2427 = vadd.f32 %v2426, %v2299
          %v2428 = vadd.f32 %v2427, %v2300
          %v2429 = vadd.f32 %v2428, %v2301
          %v2430 = vadd.f32 %v2429, %v2302
          %v2431 = vadd.f32 %v2430, %v2303
          %v2432 = vadd.f32 %v2431, %v2304
          %v2433 = vadd.f32 %v2432, %v2305
          %v2434 = vadd.f32 %v2433, %v2306
          %v2435 = vadd.f32 %v2434, %v2307
          %v2436 = vadd.f32 %v2435, %v2308
          %v2437 = vadd.f32 %v2436, %v2309
          %v2438 = vadd.f32 %v2437, %v2310
          %v2439 = vadd.f32 %v2438, %v2311
          %v2440 = vadd.f32 %v2439, %v2312
          %v2441 = vadd.f32 %v2440, %v2313
          %v2442 = vadd.f32 %v2441, %v2314
          %v2443 = vadd.f32 %v2442, %v2315
          %v2444 = vadd.f32 %v2443, %v2316
          %v2445 = vadd.f32 %v2444, %v2317
          %v2446 = vadd.f32 %v2445, %v2318
          %v2447 = vadd.f32 %v2446, %v2319
          %v2448 = vadd.f32 %v2447, %v2320
          %v2449 = vadd.f32 %v2448, %v2321
          %v2450 = vadd.f32 %v2449, %v2322
          %v2451 = vadd.f32 %v2450, %v2323
          %v2452 = vadd.f32 %v2451, %v2324
          %v2453 = vadd.f32 %v2452, %v2325
          %v2454 = vadd.f32 %v2453, %v2326
          %v2455 = vadd.f32 %v2454, %v2327
          %v2456 = vadd.f32 %v2455, %v2328
          %v2457 = vadd.f32 %v2456, %v2329
          %v2458 = vadd.f32 %v2457, %v2330
          %v2459 = vadd.f32 %v2458, %v2331
          %v2460 = vadd.f32 %v2459, %v2332
          %v2461 = vadd.f32 %v2460, %v2333
          %v2462 = vadd.f32 %v2461, %v2334
          %v2463 = vadd.f32 %v2462, %v2335
          %v2464 = vadd.f32 %v2463, %v2336
          %v2465 = vadd.f32 %v2464, %v2337
          %v2466 = vadd.f32 %v2465, %v2338
          %v2467 = vadd.f32 %v2466, %v2339
          %v2468 = vadd.f32 %v2467, %v2340
          %v2469 = vadd.f32 %v2468, %v2341
          %v2470 = vadd.f32 %v2469, %v2342
          %v2471 = vadd.f32 %v2470, %v2343
          %v2472 = vadd.f32 %v2471, %v2344
          %v2473 = vadd.f32 %v2472, %v2345
          %v2474 = vadd.f32 %v2473, %v2346
          %v2475 = vadd.f32 %v2474, %v2347
          %v2476 = vadd.f32 %v2475, %v2348
          %v2477 = vadd.f32 %v2476, %v2349
          %v2478 = vadd.f32 %v2477, %v2350
          %v2479 = vadd.f32 %v2478, %v2351
          %v2480 = vadd.f32 %v2479, %v2352
          %v2481 = vadd.f32 %v2480, %v2353
          %v2482 = vadd.f32 %v2481, %v2354
          %v2483 = vadd.f32 %v2482, %v2355
          %v2484 = vadd.f32 %v2483, %v2356
          %v2485 = vadd.f32 %v2484, %v2357
          %v2486 = vadd.f32 %v2485, %v2358
          %v2487 = vadd.f32 %v2486, %v2359
          %v2488 = vadd.f32 %v2487, %v2360
          %v2489 = vadd.f32 %v2488, %v2361
          %v2490 = vadd.f32 %v2489, %v2362
          %v2491 = vadd.f32 %v2490, %v2363
          %v2492 = vadd.f32 %v2491, %v2364
          %v2493 = vadd.f32 %v2492, %v2365
          %v2494 = vadd.f32 %v2493, %v2366
          %v2495 = vadd.f32 %v2494, %v2367
          %v2496 = vadd.f32 %v2495, %v2368
          %v2497 = vadd.f32 %v2496, %v2369
          %v2498 = vadd.f32 %v2497, %v2370
          %v2499 = vadd.f32 %v2498, %v2371
          %v2500 = vadd.f32 %v2499, %v2372
          %v2501 = vadd.f32 %v2500, %v2373
          %v2502 = vadd.f32 %v2501, %v2374
          %v2503 = vadd.f32 %v2502, %v2375
          %v2504 = vadd.f32 %v2503, %v2376
          %v2505 = vadd.f32 %v2504, %v2377
          %v2506 = vadd.f32 %v2505, %v2378
          %v2507 = vadd.f32 %v2506, %v2379
          %v2508 = vadd.f32 %v2507, %v2380
          %v2509 = vadd.f32 %v2508, %v2381
          %v2510 = vadd.f32 %v2509, %v2382
          %v2511 = vadd.f32 %v2510, %v2383
          %v2512 = vadd.f32 %v2511, %v2384
          %v2513 = vadd.f32 %v2385, %v2512
          %2514 = vst [vmem:[#allocation2] sm:$0xff] %v2513
        $region88: #{tpu_custom_call.1} parent=47 // pred_fallthru
          _
        %p2515 = scmp.eq.s32.totalorder %s25, 2
        // Predicated region
        $region89: #{tpu_custom_call.1} parent=47 // pred_check
          %p2516 = pneg %p2515
        $region90: #{tpu_custom_call.1} parent=47 // pred_check_branch
          %2518 = sbr.rel (%p2516) target = $region92
        $region91: #{tpu_custom_call.1} parent=47 // pred_region
          %v2519 = vld [vmem:[#allocation3] sm:$0x1]
          %v2520 = vld [vmem:[#allocation6] sm:$0x1]
          %v2521 = vsub.f32 1.0, %v2519
          %v2522 = vadd.f32 %v2521, %v2520
          %v2523 = vmax.f32 %v2522, 0.0
          %vm2524 = vcmask 8192
          %v2525 = vsel %vm2524, %v2523, 0.0
          %2526 = vadd.xlane.f32.xlu0 %v2525
          %v2527 = vpop.xlane.xlu0 %2526
          %v2528 = vrot.slane %v2527, 4
          %v2529 = vadd.f32 %v2527, %v2528
          %v2530 = vrot.slane %v2529, 2
          %v2531 = vadd.f32 %v2529, %v2530
          %v2532 = vrot.slane %v2531, 1
          %v2533 = vadd.f32 %v2531, %v2532
          %s2534 = vtos %v2533
          %v2535 = vstv %s2534
          %v2536 = vmul.f32 %v2535, 0.5
          %vm2537 = vcmask 0
          %2538 = vst.msk [vmem:[#allocation15] sm:$0x1] %vm2537, %v2536
          %v2539 = vld [vmem:[#allocation2] sm:$0xff]
          %2540 = vadd.xlane.f32.xlu0 %v2539
          %v2541 = vpop.xlane.xlu0 %2540
          %v2542 = vrot.slane %v2541, 4
          %v2543 = vadd.f32 %v2541, %v2542
          %v2544 = vrot.slane %v2543, 2
          %v2545 = vadd.f32 %v2543, %v2544
          %v2546 = vrot.slane %v2545, 1
          %v2547 = vadd.f32 %v2545, %v2546
          %s2548 = vtos %v2547
          %v2549 = vstv %s2548
          %v2550 = vadd.f32 %v2549, 0.0
          %v2551 = vld [vmem:[#allocation10] sm:$0xf]
          %v2552 = vmul.f32 %v2551, %v2551
          %vm2553 = vcmask 1043456
          %v2554 = vsel %vm2553, %v2552, 0.0
          %2555 = vadd.xlane.f32.xlu0 %v2554
          %v2556 = vpop.xlane.xlu0 %2555
          %v2557 = vrot.slane %v2556, 4
          %v2558 = vadd.f32 %v2556, %v2557
          %v2559 = vrot.slane %v2558, 2
          %v2560 = vadd.f32 %v2558, %v2559
          %v2561 = vrot.slane %v2560, 1
          %v2562 = vadd.f32 %v2560, %v2561
          %s2563 = vtos %v2562
          %v2564 = vstv %s2563
          %v2565 = vadd.f32 %v2550, %v2564
          %v2566 = vld [vmem:[#allocation11] sm:$0x1]
          %v2567 = vmul.f32 %v2566, %v2566
          %vm2568 = vcmask 253952
          %v2569 = vsel %vm2568, %v2567, 0.0
          %2570 = vadd.xlane.f32.xlu0 %v2569
          %v2571 = vpop.xlane.xlu0 %2570
          %v2572 = vrot.slane %v2571, 4
          %v2573 = vadd.f32 %v2571, %v2572
          %v2574 = vrot.slane %v2573, 2
          %v2575 = vadd.f32 %v2573, %v2574
          %v2576 = vrot.slane %v2575, 1
          %v2577 = vadd.f32 %v2575, %v2576
          %s2578 = vtos %v2577
          %v2579 = vstv %s2578
          %v2580 = vadd.f32 %v2565, %v2579
          %v2581 = vld [vmem:[#allocation13] sm:$0x1]
          %v2582 = vmul.f32 %v2581, %v2581
          %vm2583 = vcmask 778240
          %v2584 = vsel %vm2583, %v2582, 0.0
          %2585 = vadd.xlane.f32.xlu0 %v2584
          %v2586 = vpop.xlane.xlu0 %2585
          %v2587 = vrot.slane %v2586, 4
          %v2588 = vadd.f32 %v2586, %v2587
          %v2589 = vrot.slane %v2588, 2
          %v2590 = vadd.f32 %v2588, %v2589
          %v2591 = vrot.slane %v2590, 1
          %v2592 = vadd.f32 %v2590, %v2591
          %s2593 = vtos %v2592
          %v2594 = vstv %s2593
          %v2595 = vadd.f32 %v2580, %v2594
          %v2596 = vmul.f32 %v2595, 0.0001
          %v2597 = vadd.f32 %v2536, %v2596
          %2598 = vst.msk [vmem:[#allocation14] sm:$0x1] %vm2537, %v2597
        $region92: #{tpu_custom_call.1} parent=47 // pred_fallthru
          _
        // Predicated region
        $region93: #{tpu_custom_call.1} parent=47 // pred_check
          %p2599 = pneg %p213
        $region94: #{tpu_custom_call.1} parent=47 // pred_check_branch
          %2601 = sbr.rel (%p2599) target = $region96
        $region95: #{tpu_custom_call.1} parent=47 // pred_region
          %s2603 = ssub.s32 16, 16
          %2604 = vsyncadd [#allocation5], %s2603
          %s2606 = sshll.u32 [#allocation14], 4
          %s2607 = int_to_ptr.vmem [resolvable:$true] %s2606
          %2609 = dma.vmem_to_hbm [thread:$0]  %s2607, 16, %s7, [#allocation5]
        $region96: #{tpu_custom_call.1} parent=47 // pred_fallthru
          _
        // Predicated region
        $region97: #{tpu_custom_call.1} parent=47 // pred_check
          %p2610 = pneg %p234
        $region98: #{tpu_custom_call.1} parent=47 // pred_check_branch
          %2612 = sbr.rel (%p2610) target = $region100
        $region99: #{tpu_custom_call.1} parent=47 // pred_region
          %s2614 = ssub.s32 16, 16
          %2615 = vsyncadd [#allocation16], %s2614
          %s2617 = sshll.u32 [#allocation15], 4
          %s2618 = int_to_ptr.vmem [resolvable:$true] %s2617
          %2620 = dma.vmem_to_hbm [thread:$0]  %s2618, 16, %s8, [#allocation16]
        $region100: #{tpu_custom_call.1} parent=47 // pred_fallthru
          _
        // Predicated region
        $region101: #{tpu_custom_call.1} parent=47 // pred_check
          %p2621 = pneg %p213
        $region102: #{tpu_custom_call.1} parent=47 // pred_check_branch
          %2623 = sbr.rel (%p2621) target = $region104
        $region103: #{tpu_custom_call.1} parent=47 // pred_region
          %2624 = dma.done [#allocation5], 16
        $region104: #{tpu_custom_call.1} parent=47 // pred_fallthru
          _
        // Predicated region
        $region105: #{tpu_custom_call.1} parent=47 // pred_check
          %p2625 = pneg %p234
        $region106: #{tpu_custom_call.1} parent=47 // pred_check_branch
          %2627 = sbr.rel (%p2625) target = $region108
        $region107: #{tpu_custom_call.1} parent=47 // pred_region
          %2628 = dma.done [#allocation16], 16
        $region108: #{tpu_custom_call.1} parent=47 // pred_fallthru
          _
      $region48: #{tpu_custom_call.1} parent=5 // pred_fallthru
        _
      %p2629 = scmp.le.s32.totalorder 2, %s20
      // Predicated region
      $region109: #{tpu_custom_call.1} parent=5 // pred_check
        %p2630 = pneg %p2629
      $region110: #{tpu_custom_call.1} parent=5 // pred_check_branch
        %2632 = sbr.rel (%p2630) target = $region112
      $region111: #{tpu_custom_call.1} parent=5 // pred_region
        %s2633 = ssub.s32 %s20, 2
      $region112: #{tpu_custom_call.1} parent=5 // pred_fallthru
        _
    $region6: #{tpu_custom_call.1} parent=1 // loop_footer
      %s24 = sadd.s32 1, %s20
    $region7: #{tpu_custom_call.1} parent=1 // loop_footer_branch
      %19 = sbr.rel target = $region3
    $region8: #{tpu_custom_call.1} parent=1 // loop_exit
      _
    %2634 = vsyncpa [#allocation4], 1
    %s2635 = scalar_lea.sflag [#allocation4], 1
    %2636 = vsyncpa %s2635, 1
    %2637 = vsyncpa [#allocation7], 1
    %2638 = vsyncpa [#allocation12], 1
    %2639 = vsyncpa [#allocation5], 1
    %s2640 = scalar_lea.sflag [#allocation5], 1
    %2641 = vsyncpa %s2640, 1
    %2642 = vsyncpa [#allocation16], 1

</llo_original>
